<compile_context>
chip_gen: v5e
topology: v5e:2x2
jax: 0.10.0
libtpu: 0.0.40
codegen_flags: <defaults>
</compile_context>

<pallas_src>
import functools
import math

import jax
import jax.numpy as jnp
from jax.experimental import pallas as pl
from jax.experimental.pallas import tpu as pltpu


VMEM_LIMIT = 48 * 1024 * 1024  # headroom under v7x's 64 MiB physical VMEM


def _cparams(semantics=("parallel",)):
    return pltpu.CompilerParams(
        dimension_semantics=semantics,
        vmem_limit_bytes=VMEM_LIMIT,
    )


def _pick_tile(m, max_tile=256):
    """Row-tile size: biggest power-of-two divisor <= max_tile, else whole M."""
    if m <= max_tile:
        return m
    for t in (256, 128, 64, 32, 16, 8):
        if m % t == 0:
            return t
    return m


def _layernorm_f32(xf, g_ref, b_ref, eps=1e-5):
    """f32 LayerNorm statistics; (1, D) scale / shift broadcast over rows."""
    mu = jnp.mean(xf, axis=-1, keepdims=True)
    xc = xf - mu
    var = jnp.mean(xc * xc, axis=-1, keepdims=True)
    return xc * jax.lax.rsqrt(var + eps) * g_ref[...] + b_ref[...]


# ----------------------------------------------------------------------------
# Kernel bodies
# ----------------------------------------------------------------------------
def _clip_block_kernel(x_ref, mask_ref,
                       ln1_g, ln1_b, w_qkv, b_qkv, w_out, b_out,
                       ln2_g, ln2_b, w_fc, b_fc, w_proj, b_proj,
                       o_ref, *, heads, scale):
    """One full residual attention block for one batch element.

    x_ref: (1, T, D) bf16; o_ref: (1, T, D) bf16; mask_ref: (T, T) f32 additive.
    All intermediates (qkv, per-head scores, attention output, (T, 4D) MLP
    hidden) live only in VMEM / vregs.
    """
    xf = x_ref[0].astype(jnp.float32)                        # (T, D) f32
    T, D = xf.shape
    hd = D // heads

    # --- LN1 + fused QKV projection ---
    h1 = _layernorm_f32(xf, ln1_g, ln1_b)
    qkv = jnp.dot(h1.astype(w_qkv.dtype), w_qkv[...],
                  preferred_element_type=jnp.float32) + b_qkv[...]
    qkv = qkv.astype(jnp.bfloat16)                           # (T, 3D)

    # --- causal multi-head attention (all heads, no HBM round trips) ---
    mask = mask_ref[...]                                     # (T, T) f32
    outs = []
    for hh in range(heads):
        q = qkv[:, hh * hd:(hh + 1) * hd]
        k = qkv[:, D + hh * hd:D + (hh + 1) * hd]
        v = qkv[:, 2 * D + hh * hd:2 * D + (hh + 1) * hd]
        s = jax.lax.dot_general(q, k, (((1,), (1,)), ((), ())),
                                preferred_element_type=jnp.float32) * scale
        s = s + mask
        s = s - jnp.max(s, axis=-1, keepdims=True)
        p = jnp.exp(s)
        p = p * pl.reciprocal(jnp.sum(p, axis=-1, keepdims=True), approx=True)
        outs.append(jnp.dot(p.astype(v.dtype), v,
                            preferred_element_type=jnp.float32))
    attn = outs[0] if heads == 1 else jnp.concatenate(outs, axis=-1)  # (T, D)

    # --- attention out-projection + residual add ---
    y = jnp.dot(attn.astype(w_out.dtype), w_out[...],
                preferred_element_type=jnp.float32) + b_out[...]
    x1 = xf + y                                              # (T, D) f32

    # --- LN2 + fc + QuickGELU + proj + residual ---
    h2 = _layernorm_f32(x1, ln2_g, ln2_b)
    u = jnp.dot(h2.astype(w_fc.dtype), w_fc[...],
                preferred_element_type=jnp.float32) + b_fc[...]
    u = u * jax.nn.sigmoid(1.702 * u)                        # QuickGELU, f32
    y2 = jnp.dot(u.astype(w_proj.dtype), w_proj[...],
                 preferred_element_type=jnp.float32) + b_proj[...]

    o_ref[...] = (x1 + y2)[None, :, :].astype(o_ref.dtype)


def _pooled_head_kernel(x_ref, g_ref, b_ref, wp_ref,
                        w1_ref, b1_ref, w2_ref, b2_ref, o_ref):
    """Final LN + text projection (no bias) + Linear -> SiLU -> Linear head."""
    xf = x_ref[...].astype(jnp.float32)                      # (tm, D)
    h = _layernorm_f32(xf, g_ref, b_ref)
    feats = jnp.dot(h.astype(wp_ref.dtype), wp_ref[...],
                    preferred_element_type=jnp.float32)      # (tm, E) f32
    # fully_connected head in f32 (matches torch .type(torch.float32))
    z = jnp.dot(feats, w1_ref[...],
                preferred_element_type=jnp.float32) + b1_ref[...]
    z = z * jax.nn.sigmoid(z)                                # SiLU
    y = jnp.dot(z, w2_ref[...],
                preferred_element_type=jnp.float32) + b2_ref[...]
    o_ref[...] = y.astype(o_ref.dtype)


# ----------------------------------------------------------------------------
# Pallas-call wrappers
# ----------------------------------------------------------------------------
def pallas_clip_block(x, mask_bias, blk, heads):
    """x: (B, T, D) bf16 -> (B, T, D) bf16; one fused kernel per batch row."""
    B, T, D = x.shape
    scale = 1.0 / math.sqrt(D // heads)
    const2 = lambda b: (0, 0)
    return pl.pallas_call(
        functools.partial(_clip_block_kernel, heads=heads, scale=scale),
        grid=(B,),
        in_specs=[
            pl.BlockSpec((1, T, D), lambda b: (b, 0, 0)),    # x
            pl.BlockSpec((T, T), const2),                    # causal mask bias
            pl.BlockSpec((1, D), const2),                    # ln1_g
            pl.BlockSpec((1, D), const2),                    # ln1_b
            pl.BlockSpec((D, 3 * D), const2),                # w_qkv
            pl.BlockSpec((1, 3 * D), const2),                # b_qkv
            pl.BlockSpec((D, D), const2),                    # w_out
            pl.BlockSpec((1, D), const2),                    # b_out
            pl.BlockSpec((1, D), const2),                    # ln2_g
            pl.BlockSpec((1, D), const2),                    # ln2_b
            pl.BlockSpec((D, 4 * D), const2),                # w_fc
            pl.BlockSpec((1, 4 * D), const2),                # b_fc
            pl.BlockSpec((4 * D, D), const2),                # w_proj
            pl.BlockSpec((1, D), const2),                    # b_proj
        ],
        out_specs=pl.BlockSpec((1, T, D), lambda b: (b, 0, 0)),
        out_shape=jax.ShapeDtypeStruct((B, T, D), x.dtype),
        compiler_params=_cparams(("parallel",)),
    )(x, mask_bias,
      blk["ln1_g"], blk["ln1_b"], blk["w_qkv"], blk["b_qkv"],
      blk["w_out"], blk["b_out"],
      blk["ln2_g"], blk["ln2_b"], blk["w_fc"], blk["b_fc"],
      blk["w_proj"], blk["b_proj"])


def pallas_pooled_head(pooled, lnf_g, lnf_b, text_proj, w1, b1, w2, b2):
    """pooled: (B, D) -> (B, out_dim) f32 embedding."""
    B, D = pooled.shape
    E = text_proj.shape[1]
    O = w1.shape[1]
    tm = _pick_tile(B)
    grid = (B // tm,)
    const2 = lambda i: (0, 0)
    return pl.pallas_call(
        _pooled_head_kernel,
        grid=grid,
        in_specs=[
            pl.BlockSpec((tm, D), lambda i: (i, 0)),
            pl.BlockSpec((1, D), const2),                    # lnf_g
            pl.BlockSpec((1, D), const2),                    # lnf_b
            pl.BlockSpec((D, E), const2),                    # text_projection
            pl.BlockSpec((E, O), const2),                    # fc1_w
            pl.BlockSpec((1, O), const2),                    # fc1_b
            pl.BlockSpec((O, O), const2),                    # fc2_w
            pl.BlockSpec((1, O), const2),                    # fc2_b
        ],
        out_specs=pl.BlockSpec((tm, O), lambda i: (i, 0)),
        out_shape=jax.ShapeDtypeStruct((B, O), jnp.float32),
        compiler_params=_cparams(("parallel",)),
    )(pooled, lnf_g, lnf_b, text_proj, w1, b1, w2, b2)


# ----------------------------------------------------------------------------
# Parameter init (deterministic, synthetic — NOT the pretrained CLIP weights)
# Weights pre-cast to bf16 once; biases / LN params kept f32, pre-reshaped.
# ----------------------------------------------------------------------------
def init_params(key, cfg):
    D, L = cfg["width"], cfg["layers"]
    V, T = cfg["vocab"], cfg["context_length"]
    E, O = cfg["embed_dim"], cfg["out_dim"]

    def w_bf16(k, shape, std=0.02):
        return (std * jax.random.normal(k, shape)).astype(jnp.bfloat16)

    def w_f32(k, shape, std=0.02):
        return (std * jax.random.normal(k, shape)).astype(jnp.float32)

    keys = iter(jax.random.split(key, 128))
    params = {
        "token_embedding": w_bf16(next(keys), (V, D)),
        "positional_embedding": w_bf16(next(keys), (T, D), 0.01),
        "lnf_g": jnp.ones((1, D), jnp.float32),
        "lnf_b": jnp.zeros((1, D), jnp.float32),
        "text_projection": w_bf16(next(keys), (D, E), D ** -0.5),
        # fully_connected head: Linear(E, O) -> SiLU -> Linear(O, O), f32
        "fc1_w": w_f32(next(keys), (E, O), E ** -0.5),
        "fc1_b": jnp.zeros((1, O), jnp.float32),
        "fc2_w": w_f32(next(keys), (O, O), O ** -0.5),
        "fc2_b": jnp.zeros((1, O), jnp.float32),
        "blocks": [],
    }
    for _ in range(L):
        params["blocks"].append({
            "ln1_g": jnp.ones((1, D), jnp.float32),
            "ln1_b": jnp.zeros((1, D), jnp.float32),
            "w_qkv": w_bf16(next(keys), (D, 3 * D), D ** -0.5),
            "b_qkv": jnp.zeros((1, 3 * D), jnp.float32),
            "w_out": w_bf16(next(keys), (D, D), D ** -0.5),
            "b_out": jnp.zeros((1, D), jnp.float32),
            "ln2_g": jnp.ones((1, D), jnp.float32),
            "ln2_b": jnp.zeros((1, D), jnp.float32),
            "w_fc": w_bf16(next(keys), (D, 4 * D), D ** -0.5),
            "b_fc": jnp.zeros((1, 4 * D), jnp.float32),
            "w_proj": w_bf16(next(keys), (4 * D, D), (4 * D) ** -0.5),
            "b_proj": jnp.zeros((1, D), jnp.float32),
        })
    return params


# ----------------------------------------------------------------------------
# Forward pass (mirrors CLIPTextEmbedding.forward)
# ----------------------------------------------------------------------------
def encode_text_to_pooled(params, tokens, cfg):
    """CLIP text encoder up to (and including) EOT-token pooling."""
    B, T = tokens.shape
    D, H = cfg["width"], cfg["heads"]

    # token + positional embedding (plain-JAX gather glue), bf16 activations
    # TODO(synk): embedding gather kept in plain JAX (data-dependent gather).
    x = params["token_embedding"][tokens] \
        + params["positional_embedding"][None, :T, :]
    x = x.astype(jnp.bfloat16)                                # (B, T, D)

    # causal additive mask built once; constant index_map keeps it resident
    qi = jax.lax.broadcasted_iota(jnp.int32, (T, T), 0)
    ki = jax.lax.broadcasted_iota(jnp.int32, (T, T), 1)
    mask_bias = jnp.where(ki <= qi, 0.0, -1e30).astype(jnp.float32)

    for blk in params["blocks"]:
        x = pallas_clip_block(x, mask_bias, blk, H)           # (B, T, D)

    # EOT pooling (argmax of token ids).  Final LN is per-row, so applying it
    # only to the pooled rows (inside the fused head kernel) is exact.
    eot = jnp.argmax(tokens, axis=-1)                         # (B,)
    pooled = x[jnp.arange(B), eot]                            # (B, D)
    return pooled


def clip_text_embedding_forward(params, tokens, cfg):
    # with torch.no_grad(): x = clip.encode_text(x).type(torch.float32)
    pooled = jax.lax.stop_gradient(encode_text_to_pooled(params, tokens, cfg))
    # final LN + text projection + Linear -> SiLU -> Linear, one fused kernel
    return pallas_pooled_head(pooled, params["lnf_g"], params["lnf_b"],
                              params["text_projection"],
                              params["fc1_w"], params["fc1_b"],
                              params["fc2_w"], params["fc2_b"])


# ----------------------------------------------------------------------------
if __name__ == "__main__":
    cfg = dict(vocab=64, context_length=8, width=32, heads=4, layers=2,
               embed_dim=32, out_dim=16)

    key = jax.random.PRNGKey(0)
    kp, kt = jax.random.split(key)
    params = init_params(kp, cfg)

    B, T = 2, cfg["context_length"]
    # synthetic token ids in [1, vocab-2]; put EOT (= max id) at the last slot
    tokens = jax.random.randint(kt, (B, T), 1, cfg["vocab"] - 1, dtype=jnp.int32)
    tokens = tokens.at[:, -1].set(cfg["vocab"] - 1)

    emb = clip_text_embedding_forward(params, tokens, cfg)
    emb = jax.block_until_ready(emb)
    assert emb.shape == (B, cfg["out_dim"]) and emb.dtype == jnp.float32
    assert bool(jnp.all(jnp.isfinite(emb)))
    print("KERNEL_OK")
</pallas_src>

<mosaic_0001>
module attributes {stable_mosaic.version = 11 : i64} {
  func.func @_clip_block_kernel(%arg0: i32, %arg1: memref<1x8x32xbf16, #tpu.memory_space<vmem>>, %arg2: memref<8x8xf32, #tpu.memory_space<vmem>>, %arg3: memref<1x32xf32, #tpu.memory_space<vmem>>, %arg4: memref<1x32xf32, #tpu.memory_space<vmem>>, %arg5: memref<32x96xbf16, #tpu.memory_space<vmem>>, %arg6: memref<1x96xf32, #tpu.memory_space<vmem>>, %arg7: memref<32x32xbf16, #tpu.memory_space<vmem>>, %arg8: memref<1x32xf32, #tpu.memory_space<vmem>>, %arg9: memref<1x32xf32, #tpu.memory_space<vmem>>, %arg10: memref<1x32xf32, #tpu.memory_space<vmem>>, %arg11: memref<32x128xbf16, #tpu.memory_space<vmem>>, %arg12: memref<1x128xf32, #tpu.memory_space<vmem>>, %arg13: memref<128x32xbf16, #tpu.memory_space<vmem>>, %arg14: memref<1x32xf32, #tpu.memory_space<vmem>>, %arg15: memref<1x8x32xbf16, #tpu.memory_space<vmem>>) attributes {dimension_semantics = [#tpu.dimension_semantics<parallel>], iteration_bounds = array<i64: 2>, scalar_prefetch = 0 : i64, scratch_operands = 0 : i64, tpu.core_type = #tpu.core_type<tc>, window_params = [{transform_indices = @transform_0, window_bounds = array<i64: 1, 8, 32>}, {pipeline_mode = #tpu.pipeline_mode<synchronous>, transform_indices = @transform_1, window_bounds = array<i64: 8, 8>}, {pipeline_mode = #tpu.pipeline_mode<synchronous>, transform_indices = @transform_2, window_bounds = array<i64: 1, 32>}, {pipeline_mode = #tpu.pipeline_mode<synchronous>, transform_indices = @transform_3, window_bounds = array<i64: 1, 32>}, {pipeline_mode = #tpu.pipeline_mode<synchronous>, transform_indices = @transform_4, window_bounds = array<i64: 32, 96>}, {pipeline_mode = #tpu.pipeline_mode<synchronous>, transform_indices = @transform_5, window_bounds = array<i64: 1, 96>}, {pipeline_mode = #tpu.pipeline_mode<synchronous>, transform_indices = @transform_6, window_bounds = array<i64: 32, 32>}, {pipeline_mode = #tpu.pipeline_mode<synchronous>, transform_indices = @transform_7, window_bounds = array<i64: 1, 32>}, {pipeline_mode = #tpu.pipeline_mode<synchronous>, transform_indices = @transform_8, window_bounds = array<i64: 1, 32>}, {pipeline_mode = #tpu.pipeline_mode<synchronous>, transform_indices = @transform_9, window_bounds = array<i64: 1, 32>}, {pipeline_mode = #tpu.pipeline_mode<synchronous>, transform_indices = @transform_10, window_bounds = array<i64: 32, 128>}, {pipeline_mode = #tpu.pipeline_mode<synchronous>, transform_indices = @transform_11, window_bounds = array<i64: 1, 128>}, {pipeline_mode = #tpu.pipeline_mode<synchronous>, transform_indices = @transform_12, window_bounds = array<i64: 128, 32>}, {pipeline_mode = #tpu.pipeline_mode<synchronous>, transform_indices = @transform_13, window_bounds = array<i64: 1, 32>}, {transform_indices = @transform_14, window_bounds = array<i64: 1, 8, 32>}]} {
    %c0 = arith.constant 0 : index
    %c0_0 = arith.constant 0 : index
    %c0_1 = arith.constant 0 : index
    %0 = vector.load %arg1[%c0, %c0_0, %c0_1] : memref<1x8x32xbf16, #tpu.memory_space<vmem>>, vector<1x8x32xbf16>
    %1 = vector.shape_cast %0 : vector<1x8x32xbf16> to vector<8x32xbf16>
    %2 = arith.extf %1 : vector<8x32xbf16> to vector<8x32xf32>
    %cst = arith.constant dense<0.000000e+00> : vector<8xf32>
    %3 = vector.multi_reduction <add>, %2, %cst [1] : vector<8x32xf32> to vector<8xf32>
    %4 = vector.shape_cast %3 : vector<8xf32> to vector<8x1xf32>
    %cst_2 = arith.constant 3.200000e+01 : f32
    %5 = vector.broadcast %cst_2 : f32 to vector<8x1xf32>
    %6 = arith.divf %4, %5 : vector<8x1xf32>
    %7 = vector.broadcast %6 : vector<8x1xf32> to vector<8x32xf32>
    %8 = arith.subf %2, %7 : vector<8x32xf32>
    %9 = arith.mulf %8, %8 : vector<8x32xf32>
    %cst_3 = arith.constant dense<0.000000e+00> : vector<8xf32>
    %10 = vector.multi_reduction <add>, %9, %cst_3 [1] : vector<8x32xf32> to vector<8xf32>
    %11 = vector.shape_cast %10 : vector<8xf32> to vector<8x1xf32>
    %cst_4 = arith.constant 3.200000e+01 : f32
    %12 = vector.broadcast %cst_4 : f32 to vector<8x1xf32>
    %13 = arith.divf %11, %12 : vector<8x1xf32>
    %cst_5 = arith.constant 9.99999974E-6 : f32
    %14 = vector.broadcast %cst_5 : f32 to vector<8x1xf32>
    %15 = arith.addf %13, %14 : vector<8x1xf32>
    %16 = math.rsqrt %15 : vector<8x1xf32>
    %17 = vector.broadcast %16 : vector<8x1xf32> to vector<8x32xf32>
    %18 = arith.mulf %8, %17 : vector<8x32xf32>
    %c0_6 = arith.constant 0 : index
    %c0_7 = arith.constant 0 : index
    %19 = vector.load %arg3[%c0_6, %c0_7] : memref<1x32xf32, #tpu.memory_space<vmem>>, vector<1x32xf32>
    %20 = vector.broadcast %19 : vector<1x32xf32> to vector<8x32xf32>
    %21 = arith.mulf %18, %20 : vector<8x32xf32>
    %c0_8 = arith.constant 0 : index
    %c0_9 = arith.constant 0 : index
    %22 = vector.load %arg4[%c0_8, %c0_9] : memref<1x32xf32, #tpu.memory_space<vmem>>, vector<1x32xf32>
    %23 = vector.broadcast %22 : vector<1x32xf32> to vector<8x32xf32>
    %24 = arith.addf %21, %23 : vector<8x32xf32>
    %25 = arith.truncf %24 : vector<8x32xf32> to vector<8x32xbf16>
    %c0_10 = arith.constant 0 : index
    %c0_11 = arith.constant 0 : index
    %26 = vector.load %arg5[%c0_10, %c0_11] : memref<32x96xbf16, #tpu.memory_space<vmem>>, vector<32x96xbf16>
    %cst_12 = arith.constant dense<0.000000e+00> : vector<8x96xf32>
    %27 = tpu.matmul %25, %26, %cst_12 {dimension_numbers = #tpu.dot_dimension_numbers<[1], [0], [0], [1], [0, 0, 1, 1], [], []>} : vector<8x32xbf16>, vector<32x96xbf16>, vector<8x96xf32> -> vector<8x96xf32>
    %c0_13 = arith.constant 0 : index
    %c0_14 = arith.constant 0 : index
    %28 = vector.load %arg6[%c0_13, %c0_14] : memref<1x96xf32, #tpu.memory_space<vmem>>, vector<1x96xf32>
    %29 = vector.broadcast %28 : vector<1x96xf32> to vector<8x96xf32>
    %30 = arith.addf %27, %29 : vector<8x96xf32>
    %31 = arith.truncf %30 : vector<8x96xf32> to vector<8x96xbf16>
    %c0_15 = arith.constant 0 : index
    %c0_16 = arith.constant 0 : index
    %32 = vector.load %arg2[%c0_15, %c0_16] : memref<8x8xf32, #tpu.memory_space<vmem>>, vector<8x8xf32>
    %33 = vector.extract_strided_slice %31 {offsets = [0, 0], sizes = [8, 8], strides = [1, 1]} : vector<8x96xbf16> to vector<8x8xbf16>
    %34 = vector.extract_strided_slice %31 {offsets = [0, 32], sizes = [8, 8], strides = [1, 1]} : vector<8x96xbf16> to vector<8x8xbf16>
    %35 = vector.extract_strided_slice %31 {offsets = [0, 64], sizes = [8, 8], strides = [1, 1]} : vector<8x96xbf16> to vector<8x8xbf16>
    %cst_17 = arith.constant dense<0.000000e+00> : vector<8x8xf32>
    %36 = tpu.matmul %33, %34, %cst_17 {dimension_numbers = #tpu.dot_dimension_numbers<[1], [1], [0], [0], [0, 0, 1, 0], [], []>} : vector<8x8xbf16>, vector<8x8xbf16>, vector<8x8xf32> -> vector<8x8xf32>
    %cst_18 = arith.constant 0.353553385 : f32
    %37 = vector.broadcast %cst_18 : f32 to vector<8x8xf32>
    %38 = arith.mulf %36, %37 : vector<8x8xf32>
    %39 = arith.addf %38, %32 : vector<8x8xf32>
    %cst_19 = arith.constant dense<0xFF800000> : vector<8xf32>
    %40 = vector.multi_reduction <maximumf>, %39, %cst_19 [1] : vector<8x8xf32> to vector<8xf32>
    %41 = vector.shape_cast %40 : vector<8xf32> to vector<8x1xf32>
    %42 = vector.broadcast %41 : vector<8x1xf32> to vector<8x8xf32>
    %43 = arith.subf %39, %42 : vector<8x8xf32>
    %44 = math.exp %43 : vector<8x8xf32>
    %cst_20 = arith.constant dense<0.000000e+00> : vector<8xf32>
    %45 = vector.multi_reduction <add>, %44, %cst_20 [1] : vector<8x8xf32> to vector<8xf32>
    %46 = vector.shape_cast %45 : vector<8xf32> to vector<8x1xf32>
    %47 = tpu.reciprocal %46 {approx = true} : vector<8x1xf32> -> vector<8x1xf32>
    %48 = vector.broadcast %47 : vector<8x1xf32> to vector<8x8xf32>
    %49 = arith.mulf %44, %48 : vector<8x8xf32>
    %50 = arith.truncf %49 : vector<8x8xf32> to vector<8x8xbf16>
    %cst_21 = arith.constant dense<0.000000e+00> : vector<8x8xf32>
    %51 = tpu.matmul %50, %35, %cst_21 {dimension_numbers = #tpu.dot_dimension_numbers<[1], [0], [0], [1], [0, 0, 1, 1], [], []>} : vector<8x8xbf16>, vector<8x8xbf16>, vector<8x8xf32> -> vector<8x8xf32>
    %52 = vector.extract_strided_slice %31 {offsets = [0, 8], sizes = [8, 8], strides = [1, 1]} : vector<8x96xbf16> to vector<8x8xbf16>
    %53 = vector.extract_strided_slice %31 {offsets = [0, 40], sizes = [8, 8], strides = [1, 1]} : vector<8x96xbf16> to vector<8x8xbf16>
    %54 = vector.extract_strided_slice %31 {offsets = [0, 72], sizes = [8, 8], strides = [1, 1]} : vector<8x96xbf16> to vector<8x8xbf16>
    %cst_22 = arith.constant dense<0.000000e+00> : vector<8x8xf32>
    %55 = tpu.matmul %52, %53, %cst_22 {dimension_numbers = #tpu.dot_dimension_numbers<[1], [1], [0], [0], [0, 0, 1, 0], [], []>} : vector<8x8xbf16>, vector<8x8xbf16>, vector<8x8xf32> -> vector<8x8xf32>
    %cst_23 = arith.constant 0.353553385 : f32
    %56 = vector.broadcast %cst_23 : f32 to vector<8x8xf32>
    %57 = arith.mulf %55, %56 : vector<8x8xf32>
    %58 = arith.addf %57, %32 : vector<8x8xf32>
    %cst_24 = arith.constant dense<0xFF800000> : vector<8xf32>
    %59 = vector.multi_reduction <maximumf>, %58, %cst_24 [1] : vector<8x8xf32> to vector<8xf32>
    %60 = vector.shape_cast %59 : vector<8xf32> to vector<8x1xf32>
    %61 = vector.broadcast %60 : vector<8x1xf32> to vector<8x8xf32>
    %62 = arith.subf %58, %61 : vector<8x8xf32>
    %63 = math.exp %62 : vector<8x8xf32>
    %cst_25 = arith.constant dense<0.000000e+00> : vector<8xf32>
    %64 = vector.multi_reduction <add>, %63, %cst_25 [1] : vector<8x8xf32> to vector<8xf32>
    %65 = vector.shape_cast %64 : vector<8xf32> to vector<8x1xf32>
    %66 = tpu.reciprocal %65 {approx = true} : vector<8x1xf32> -> vector<8x1xf32>
    %67 = vector.broadcast %66 : vector<8x1xf32> to vector<8x8xf32>
    %68 = arith.mulf %63, %67 : vector<8x8xf32>
    %69 = arith.truncf %68 : vector<8x8xf32> to vector<8x8xbf16>
    %cst_26 = arith.constant dense<0.000000e+00> : vector<8x8xf32>
    %70 = tpu.matmul %69, %54, %cst_26 {dimension_numbers = #tpu.dot_dimension_numbers<[1], [0], [0], [1], [0, 0, 1, 1], [], []>} : vector<8x8xbf16>, vector<8x8xbf16>, vector<8x8xf32> -> vector<8x8xf32>
    %71 = vector.extract_strided_slice %31 {offsets = [0, 16], sizes = [8, 8], strides = [1, 1]} : vector<8x96xbf16> to vector<8x8xbf16>
    %72 = vector.extract_strided_slice %31 {offsets = [0, 48], sizes = [8, 8], strides = [1, 1]} : vector<8x96xbf16> to vector<8x8xbf16>
    %73 = vector.extract_strided_slice %31 {offsets = [0, 80], sizes = [8, 8], strides = [1, 1]} : vector<8x96xbf16> to vector<8x8xbf16>
    %cst_27 = arith.constant dense<0.000000e+00> : vector<8x8xf32>
    %74 = tpu.matmul %71, %72, %cst_27 {dimension_numbers = #tpu.dot_dimension_numbers<[1], [1], [0], [0], [0, 0, 1, 0], [], []>} : vector<8x8xbf16>, vector<8x8xbf16>, vector<8x8xf32> -> vector<8x8xf32>
    %cst_28 = arith.constant 0.353553385 : f32
    %75 = vector.broadcast %cst_28 : f32 to vector<8x8xf32>
    %76 = arith.mulf %74, %75 : vector<8x8xf32>
    %77 = arith.addf %76, %32 : vector<8x8xf32>
    %cst_29 = arith.constant dense<0xFF800000> : vector<8xf32>
    %78 = vector.multi_reduction <maximumf>, %77, %cst_29 [1] : vector<8x8xf32> to vector<8xf32>
    %79 = vector.shape_cast %78 : vector<8xf32> to vector<8x1xf32>
    %80 = vector.broadcast %79 : vector<8x1xf32> to vector<8x8xf32>
    %81 = arith.subf %77, %80 : vector<8x8xf32>
    %82 = math.exp %81 : vector<8x8xf32>
    %cst_30 = arith.constant dense<0.000000e+00> : vector<8xf32>
    %83 = vector.multi_reduction <add>, %82, %cst_30 [1] : vector<8x8xf32> to vector<8xf32>
    %84 = vector.shape_cast %83 : vector<8xf32> to vector<8x1xf32>
    %85 = tpu.reciprocal %84 {approx = true} : vector<8x1xf32> -> vector<8x1xf32>
    %86 = vector.broadcast %85 : vector<8x1xf32> to vector<8x8xf32>
    %87 = arith.mulf %82, %86 : vector<8x8xf32>
    %88 = arith.truncf %87 : vector<8x8xf32> to vector<8x8xbf16>
    %cst_31 = arith.constant dense<0.000000e+00> : vector<8x8xf32>
    %89 = tpu.matmul %88, %73, %cst_31 {dimension_numbers = #tpu.dot_dimension_numbers<[1], [0], [0], [1], [0, 0, 1, 1], [], []>} : vector<8x8xbf16>, vector<8x8xbf16>, vector<8x8xf32> -> vector<8x8xf32>
    %90 = vector.extract_strided_slice %31 {offsets = [0, 24], sizes = [8, 8], strides = [1, 1]} : vector<8x96xbf16> to vector<8x8xbf16>
    %91 = vector.extract_strided_slice %31 {offsets = [0, 56], sizes = [8, 8], strides = [1, 1]} : vector<8x96xbf16> to vector<8x8xbf16>
    %92 = vector.extract_strided_slice %31 {offsets = [0, 88], sizes = [8, 8], strides = [1, 1]} : vector<8x96xbf16> to vector<8x8xbf16>
    %cst_32 = arith.constant dense<0.000000e+00> : vector<8x8xf32>
    %93 = tpu.matmul %90, %91, %cst_32 {dimension_numbers = #tpu.dot_dimension_numbers<[1], [1], [0], [0], [0, 0, 1, 0], [], []>} : vector<8x8xbf16>, vector<8x8xbf16>, vector<8x8xf32> -> vector<8x8xf32>
    %cst_33 = arith.constant 0.353553385 : f32
    %94 = vector.broadcast %cst_33 : f32 to vector<8x8xf32>
    %95 = arith.mulf %93, %94 : vector<8x8xf32>
    %96 = arith.addf %95, %32 : vector<8x8xf32>
    %cst_34 = arith.constant dense<0xFF800000> : vector<8xf32>
    %97 = vector.multi_reduction <maximumf>, %96, %cst_34 [1] : vector<8x8xf32> to vector<8xf32>
    %98 = vector.shape_cast %97 : vector<8xf32> to vector<8x1xf32>
    %99 = vector.broadcast %98 : vector<8x1xf32> to vector<8x8xf32>
    %100 = arith.subf %96, %99 : vector<8x8xf32>
    %101 = math.exp %100 : vector<8x8xf32>
    %cst_35 = arith.constant dense<0.000000e+00> : vector<8xf32>
    %102 = vector.multi_reduction <add>, %101, %cst_35 [1] : vector<8x8xf32> to vector<8xf32>
    %103 = vector.shape_cast %102 : vector<8xf32> to vector<8x1xf32>
    %104 = tpu.reciprocal %103 {approx = true} : vector<8x1xf32> -> vector<8x1xf32>
    %105 = vector.broadcast %104 : vector<8x1xf32> to vector<8x8xf32>
    %106 = arith.mulf %101, %105 : vector<8x8xf32>
    %107 = arith.truncf %106 : vector<8x8xf32> to vector<8x8xbf16>
    %cst_36 = arith.constant dense<0.000000e+00> : vector<8x8xf32>
    %108 = tpu.matmul %107, %92, %cst_36 {dimension_numbers = #tpu.dot_dimension_numbers<[1], [0], [0], [1], [0, 0, 1, 1], [], []>} : vector<8x8xbf16>, vector<8x8xbf16>, vector<8x8xf32> -> vector<8x8xf32>
    %109 = tpu.concatenate %51, %70, %89, %108 in 1 : vector<8x8xf32>, vector<8x8xf32>, vector<8x8xf32>, vector<8x8xf32> -> vector<8x32xf32>
    %110 = arith.truncf %109 : vector<8x32xf32> to vector<8x32xbf16>
    %c0_37 = arith.constant 0 : index
    %c0_38 = arith.constant 0 : index
    %111 = vector.load %arg7[%c0_37, %c0_38] : memref<32x32xbf16, #tpu.memory_space<vmem>>, vector<32x32xbf16>
    %cst_39 = arith.constant dense<0.000000e+00> : vector<8x32xf32>
    %112 = tpu.matmul %110, %111, %cst_39 {dimension_numbers = #tpu.dot_dimension_numbers<[1], [0], [0], [1], [0, 0, 1, 1], [], []>} : vector<8x32xbf16>, vector<32x32xbf16>, vector<8x32xf32> -> vector<8x32xf32>
    %c0_40 = arith.constant 0 : index
    %c0_41 = arith.constant 0 : index
    %113 = vector.load %arg8[%c0_40, %c0_41] : memref<1x32xf32, #tpu.memory_space<vmem>>, vector<1x32xf32>
    %114 = vector.broadcast %113 : vector<1x32xf32> to vector<8x32xf32>
    %115 = arith.addf %112, %114 : vector<8x32xf32>
    %116 = arith.addf %2, %115 : vector<8x32xf32>
    %cst_42 = arith.constant dense<0.000000e+00> : vector<8xf32>
    %117 = vector.multi_reduction <add>, %116, %cst_42 [1] : vector<8x32xf32> to vector<8xf32>
    %118 = vector.shape_cast %117 : vector<8xf32> to vector<8x1xf32>
    %cst_43 = arith.constant 3.200000e+01 : f32
    %119 = vector.broadcast %cst_43 : f32 to vector<8x1xf32>
    %120 = arith.divf %118, %119 : vector<8x1xf32>
    %121 = vector.broadcast %120 : vector<8x1xf32> to vector<8x32xf32>
    %122 = arith.subf %116, %121 : vector<8x32xf32>
    %123 = arith.mulf %122, %122 : vector<8x32xf32>
    %cst_44 = arith.constant dense<0.000000e+00> : vector<8xf32>
    %124 = vector.multi_reduction <add>, %123, %cst_44 [1] : vector<8x32xf32> to vector<8xf32>
    %125 = vector.shape_cast %124 : vector<8xf32> to vector<8x1xf32>
    %cst_45 = arith.constant 3.200000e+01 : f32
    %126 = vector.broadcast %cst_45 : f32 to vector<8x1xf32>
    %127 = arith.divf %125, %126 : vector<8x1xf32>
    %cst_46 = arith.constant 9.99999974E-6 : f32
    %128 = vector.broadcast %cst_46 : f32 to vector<8x1xf32>
    %129 = arith.addf %127, %128 : vector<8x1xf32>
    %130 = math.rsqrt %129 : vector<8x1xf32>
    %131 = vector.broadcast %130 : vector<8x1xf32> to vector<8x32xf32>
    %132 = arith.mulf %122, %131 : vector<8x32xf32>
    %c0_47 = arith.constant 0 : index
    %c0_48 = arith.constant 0 : index
    %133 = vector.load %arg9[%c0_47, %c0_48] : memref<1x32xf32, #tpu.memory_space<vmem>>, vector<1x32xf32>
    %134 = vector.broadcast %133 : vector<1x32xf32> to vector<8x32xf32>
    %135 = arith.mulf %132, %134 : vector<8x32xf32>
    %c0_49 = arith.constant 0 : index
    %c0_50 = arith.constant 0 : index
    %136 = vector.load %arg10[%c0_49, %c0_50] : memref<1x32xf32, #tpu.memory_space<vmem>>, vector<1x32xf32>
    %137 = vector.broadcast %136 : vector<1x32xf32> to vector<8x32xf32>
    %138 = arith.addf %135, %137 : vector<8x32xf32>
    %139 = arith.truncf %138 : vector<8x32xf32> to vector<8x32xbf16>
    %c0_51 = arith.constant 0 : index
    %c0_52 = arith.constant 0 : index
    %140 = vector.load %arg11[%c0_51, %c0_52] : memref<32x128xbf16, #tpu.memory_space<vmem>>, vector<32x128xbf16>
    %cst_53 = arith.constant dense<0.000000e+00> : vector<8x128xf32>
    %141 = tpu.matmul %139, %140, %cst_53 {dimension_numbers = #tpu.dot_dimension_numbers<[1], [0], [0], [1], [0, 0, 1, 1], [], []>} : vector<8x32xbf16>, vector<32x128xbf16>, vector<8x128xf32> -> vector<8x128xf32>
    %c0_54 = arith.constant 0 : index
    %c0_55 = arith.constant 0 : index
    %142 = vector.load %arg12[%c0_54, %c0_55] : memref<1x128xf32, #tpu.memory_space<vmem>>, vector<1x128xf32>
    %143 = vector.broadcast %142 : vector<1x128xf32> to vector<8x128xf32>
    %144 = arith.addf %141, %143 : vector<8x128xf32>
    %cst_56 = arith.constant 1.702000e+00 : f32
    %145 = vector.broadcast %cst_56 : f32 to vector<8x128xf32>
    %146 = arith.mulf %145, %144 : vector<8x128xf32>
    %147 = arith.negf %146 : vector<8x128xf32>
    %148 = math.exp %147 : vector<8x128xf32>
    %cst_57 = arith.constant 1.000000e+00 : f32
    %149 = vector.broadcast %cst_57 : f32 to vector<8x128xf32>
    %150 = arith.addf %149, %148 : vector<8x128xf32>
    %151 = arith.divf %149, %150 : vector<8x128xf32>
    %152 = arith.mulf %144, %151 : vector<8x128xf32>
    %153 = arith.truncf %152 : vector<8x128xf32> to vector<8x128xbf16>
    %c0_58 = arith.constant 0 : index
    %c0_59 = arith.constant 0 : index
    %154 = vector.load %arg13[%c0_58, %c0_59] : memref<128x32xbf16, #tpu.memory_space<vmem>>, vector<128x32xbf16>
    %cst_60 = arith.constant dense<0.000000e+00> : vector<8x32xf32>
    %155 = tpu.matmul %153, %154, %cst_60 {dimension_numbers = #tpu.dot_dimension_numbers<[1], [0], [0], [1], [0, 0, 1, 1], [], []>} : vector<8x128xbf16>, vector<128x32xbf16>, vector<8x32xf32> -> vector<8x32xf32>
    %c0_61 = arith.constant 0 : index
    %c0_62 = arith.constant 0 : index
    %156 = vector.load %arg14[%c0_61, %c0_62] : memref<1x32xf32, #tpu.memory_space<vmem>>, vector<1x32xf32>
    %157 = vector.broadcast %156 : vector<1x32xf32> to vector<8x32xf32>
    %158 = arith.addf %155, %157 : vector<8x32xf32>
    %159 = arith.addf %116, %158 : vector<8x32xf32>
    %160 = vector.shape_cast %159 : vector<8x32xf32> to vector<1x8x32xf32>
    %161 = arith.truncf %160 : vector<1x8x32xf32> to vector<1x8x32xbf16>
    %c0_63 = arith.constant 0 : index
    %c0_64 = arith.constant 0 : index
    %c0_65 = arith.constant 0 : index
    %162 = vector.load %arg15[%c0_63, %c0_64, %c0_65] : memref<1x8x32xbf16, #tpu.memory_space<vmem>>, vector<1x8x32xbf16>
    tpu.vector_store %arg15[%c0_63, %c0_64, %c0_65], %161 {strides = array<i32>} : memref<1x8x32xbf16, #tpu.memory_space<vmem>>, vector<1x8x32xbf16>,
    return
  }
  func.func @transform_0(%arg0: i32) -> (i32, i32, i32) {
    %c0_i32 = arith.constant 0 : i32
    %c0_i32_0 = arith.constant 0 : i32
    %c0_i32_1 = arith.constant 0 : i32
    return %arg0, %c0_i32, %c0_i32_0 : i32, i32, i32
  }
  func.func @transform_1(%arg0: i32) -> (i32, i32) {
    %c0_i32 = arith.constant 0 : i32
    %c0_i32_0 = arith.constant 0 : i32
    %c0_i32_1 = arith.constant 0 : i32
    return %c0_i32, %c0_i32_0 : i32, i32
  }
  func.func @transform_2(%arg0: i32) -> (i32, i32) {
    %c0_i32 = arith.constant 0 : i32
    %c0_i32_0 = arith.constant 0 : i32
    %c0_i32_1 = arith.constant 0 : i32
    return %c0_i32, %c0_i32_0 : i32, i32
  }
  func.func @transform_3(%arg0: i32) -> (i32, i32) {
    %c0_i32 = arith.constant 0 : i32
    %c0_i32_0 = arith.constant 0 : i32
    %c0_i32_1 = arith.constant 0 : i32
    return %c0_i32, %c0_i32_0 : i32, i32
  }
  func.func @transform_4(%arg0: i32) -> (i32, i32) {
    %c0_i32 = arith.constant 0 : i32
    %c0_i32_0 = arith.constant 0 : i32
    %c0_i32_1 = arith.constant 0 : i32
    return %c0_i32, %c0_i32_0 : i32, i32
  }
  func.func @transform_5(%arg0: i32) -> (i32, i32) {
    %c0_i32 = arith.constant 0 : i32
    %c0_i32_0 = arith.constant 0 : i32
    %c0_i32_1 = arith.constant 0 : i32
    return %c0_i32, %c0_i32_0 : i32, i32
  }
  func.func @transform_6(%arg0: i32) -> (i32, i32) {
    %c0_i32 = arith.constant 0 : i32
    %c0_i32_0 = arith.constant 0 : i32
    %c0_i32_1 = arith.constant 0 : i32
    return %c0_i32, %c0_i32_0 : i32, i32
  }
  func.func @transform_7(%arg0: i32) -> (i32, i32) {
    %c0_i32 = arith.constant 0 : i32
    %c0_i32_0 = arith.constant 0 : i32
    %c0_i32_1 = arith.constant 0 : i32
    return %c0_i32, %c0_i32_0 : i32, i32
  }
  func.func @transform_8(%arg0: i32) -> (i32, i32) {
    %c0_i32 = arith.constant 0 : i32
    %c0_i32_0 = arith.constant 0 : i32
    %c0_i32_1 = arith.constant 0 : i32
    return %c0_i32, %c0_i32_0 : i32, i32
  }
  func.func @transform_9(%arg0: i32) -> (i32, i32) {
    %c0_i32 = arith.constant 0 : i32
    %c0_i32_0 = arith.constant 0 : i32
    %c0_i32_1 = arith.constant 0 : i32
    return %c0_i32, %c0_i32_0 : i32, i32
  }
  func.func @transform_10(%arg0: i32) -> (i32, i32) {
    %c0_i32 = arith.constant 0 : i32
    %c0_i32_0 = arith.constant 0 : i32
    %c0_i32_1 = arith.constant 0 : i32
    return %c0_i32, %c0_i32_0 : i32, i32
  }
  func.func @transform_11(%arg0: i32) -> (i32, i32) {
    %c0_i32 = arith.constant 0 : i32
    %c0_i32_0 = arith.constant 0 : i32
    %c0_i32_1 = arith.constant 0 : i32
    return %c0_i32, %c0_i32_0 : i32, i32
  }
  func.func @transform_12(%arg0: i32) -> (i32, i32) {
    %c0_i32 = arith.constant 0 : i32
    %c0_i32_0 = arith.constant 0 : i32
    %c0_i32_1 = arith.constant 0 : i32
    return %c0_i32, %c0_i32_0 : i32, i32
  }
  func.func @transform_13(%arg0: i32) -> (i32, i32) {
    %c0_i32 = arith.constant 0 : i32
    %c0_i32_0 = arith.constant 0 : i32
    %c0_i32_1 = arith.constant 0 : i32
    return %c0_i32, %c0_i32_0 : i32, i32
  }
  func.func @transform_14(%arg0: i32) -> (i32, i32, i32) {
    %c0_i32 = arith.constant 0 : i32
    %c0_i32_0 = arith.constant 0 : i32
    %c0_i32_1 = arith.constant 0 : i32
    return %arg0, %c0_i32, %c0_i32_0 : i32, i32, i32
  }
}

</mosaic_0001>

<llo_original>
// kernel: tpu_custom_call.1
$region0: #{tpu_custom_call.1}
  #allocation0 [shape = 'u32[]', space=smem, size = 0x4, offset = 0x4, fixed_abs, tag = 'smem constant byte address 0x4 - core index']
  #allocation1 [shape = 'u32[72,128]{1,0:T(1,128)}', space=vmem, size = 0x9000, scoped, tag = 'internal scratch']
  %s0 = inlined_call_operand.vmem [shape: bf16[2,8,32], index: 0, kind: input, shape index: {}]
  %s1 = inlined_call_operand.vmem [shape: f32[8,8], index: 1, kind: input, shape index: {}]
  %s2 = inlined_call_operand.vmem [shape: f32[1,32], index: 2, kind: input, shape index: {}]
  %s3 = inlined_call_operand.vmem [shape: f32[1,32], index: 3, kind: input, shape index: {}]
  %s4 = inlined_call_operand.vmem [shape: bf16[32,96], index: 4, kind: input, shape index: {}]
  %s5 = inlined_call_operand.vmem [shape: f32[1,96], index: 5, kind: input, shape index: {}]
  %s6 = inlined_call_operand.vmem [shape: bf16[32,32], index: 6, kind: input, shape index: {}]
  %s7 = inlined_call_operand.vmem [shape: f32[1,32], index: 7, kind: input, shape index: {}]
  %s8 = inlined_call_operand.vmem [shape: f32[1,32], index: 8, kind: input, shape index: {}]
  %s9 = inlined_call_operand.vmem [shape: f32[1,32], index: 9, kind: input, shape index: {}]
  %s10 = inlined_call_operand.vmem [shape: bf16[32,128], index: 10, kind: input, shape index: {}]
  %s11 = inlined_call_operand.vmem [shape: f32[1,128], index: 11, kind: input, shape index: {}]
  %s12 = inlined_call_operand.vmem [shape: bf16[128,32], index: 12, kind: input, shape index: {}]
  %s13 = inlined_call_operand.vmem [shape: f32[1,32], index: 13, kind: input, shape index: {}]
  %s14 = inlined_call_operand.hbm [shape: bf16[2,8,32], index: 14, kind: output, shape index: {}]
  %s15 = sld [smem:[#allocation0]]
  $region89: #{tpu_custom_call.1} parent=0
    _
  %s17 = ssub.s32 1, %s15
  %s18 = scalar_select 0, %s17, %s15
  $region1: #{tpu_custom_call.1} parent=0
    #allocation2 [shape = 'u8[4096]{0}', space=vmem, size = 0x1000, scoped, tag = 'output window, operand 0']
    #allocation3 [shape = 's32[2]{0}', space=sflag, size = 0x8, scoped, tag = 'scoped memory for tpu_custom_call.1']
    %19 = vsyncpa [#allocation3], 0
    %s20 = scalar_lea.sflag [#allocation3], 1
    %21 = vsyncpa %s20, 0
    loop: start=0, step=1, limit=4
    $region2: #{tpu_custom_call.1} parent=1 // loop_pre_header
      _
    $region3: #{tpu_custom_call.1} parent=1 // loop_header
      %s23 = sphi 0, %s27
      %p24 = scmp.ge.s32.totalorder %s23, 4
      %s33 = sphi 0, %s35
      %s36 = sphi 0, %s33
      %s37 = sphi 0, %s36
      %s53 = sphi 0, %s37
      %s57 = sphi 0, %s57
      %s59 = sphi 0, %s57
      %s60 = sphi 0, %s59
      %s74 = sphi 0, %s60
      %s78 = sphi 0, %s78
      %s80 = sphi 0, %s78
      %s81 = sphi 0, %s80
      %s95 = sphi 0, %s81
      %s99 = sphi 0, %s99
      %s101 = sphi 0, %s99
      %s102 = sphi 0, %s101
      %s116 = sphi 0, %s102
      %s120 = sphi 0, %s120
      %s122 = sphi 0, %s120
      %s123 = sphi 0, %s122
      %s137 = sphi 0, %s123
      %s141 = sphi 0, %s141
      %s143 = sphi 0, %s141
      %s144 = sphi 0, %s143
      %s158 = sphi 0, %s144
      %s162 = sphi 0, %s162
      %s164 = sphi 0, %s162
      %s165 = sphi 0, %s164
      %s179 = sphi 0, %s165
      %s183 = sphi 0, %s183
      %s185 = sphi 0, %s183
      %s186 = sphi 0, %s185
      %s200 = sphi 0, %s186
      %s204 = sphi 0, %s204
      %s206 = sphi 0, %s204
      %s207 = sphi 0, %s206
      %s221 = sphi 0, %s207
      %s225 = sphi 0, %s225
      %s227 = sphi 0, %s225
      %s228 = sphi 0, %s227
      %s242 = sphi 0, %s228
      %s246 = sphi 0, %s246
      %s248 = sphi 0, %s246
      %s249 = sphi 0, %s248
      %s263 = sphi 0, %s249
      %s267 = sphi 0, %s267
      %s269 = sphi 0, %s267
      %s270 = sphi 0, %s269
      %s284 = sphi 0, %s270
      %s288 = sphi 0, %s288
      %s290 = sphi 0, %s288
      %s291 = sphi 0, %s290
      %s305 = sphi 0, %s291
      %s309 = sphi 0, %s309
      %s311 = sphi 0, %s309
      %s312 = sphi 0, %s311
      %s326 = sphi 0, %s312
      %s332 = sphi 0, %s334
      %s335 = sphi 0, %s332
      %s336 = sphi 0, %s335
      %s352 = sphi 0, %s336
    $region4: #{tpu_custom_call.1} parent=1 // loop_header_branch
      %26 = sbr.rel (%p24) target = $region8
    $region5: #{tpu_custom_call.1} parent=1 // loop_body
      %s28 = ssub.s32 %s23, 1
      %s29 = ssub.s32 %s23, 2
      %s30 = sadd.s32 %s23, 1
      %s31 = ssub.s32 %s23, %s30
      %p32 = scmp.eq.s32.totalorder %s31, 0
      %s34 = sadd.s32 %s33, 1
      %s35 = scalar_select %p32, %s33, %s34
      %p38 = pneg %p32
      %p39 = scmp.eq.s32.totalorder %s23, 1
      %p40 = por %p38, %p39
      %p41 = scmp.ne.s32.totalorder %s33, %s36
      %p42 = scmp.eq.s32.totalorder %s23, 0
      %p43 = por %p41, %p42
      %p44 = scmp.ne.s32.totalorder %s33, %s36
      %p45 = scmp.eq.s32.totalorder %s28, 1
      %p46 = por %p44, %p45
      %p47 = scmp.ne.s32.totalorder %s36, %s37
      %p48 = scmp.eq.s32.totalorder %s28, 0
      %p49 = por %p47, %p48
      %p50 = scmp.ne.s32.totalorder %s36, %s37
      %p51 = scmp.eq.s32.totalorder %s29, 1
      %p52 = por %p50, %p51
      %p54 = scmp.ne.s32.totalorder %s37, %s53
      %p55 = scmp.eq.s32.totalorder %s29, 0
      %p56 = por %p54, %p55
      %s58 = sadd.s32 %s57, 1
      %p61 = scmp.eq.s32.totalorder %s23, 1
      %p62 = scmp.ne.s32.totalorder %s57, %s59
      %p63 = scmp.eq.s32.totalorder %s23, 0
      %p64 = por %p62, %p63
      %p65 = scmp.ne.s32.totalorder %s57, %s59
      %p66 = scmp.eq.s32.totalorder %s28, 1
      %p67 = por %p65, %p66
      %p68 = scmp.ne.s32.totalorder %s59, %s60
      %p69 = scmp.eq.s32.totalorder %s28, 0
      %p70 = por %p68, %p69
      %p71 = scmp.ne.s32.totalorder %s59, %s60
      %p72 = scmp.eq.s32.totalorder %s29, 1
      %p73 = por %p71, %p72
      %p75 = scmp.ne.s32.totalorder %s60, %s74
      %p76 = scmp.eq.s32.totalorder %s29, 0
      %p77 = por %p75, %p76
      %s79 = sadd.s32 %s78, 1
      %p82 = scmp.eq.s32.totalorder %s23, 1
      %p83 = scmp.ne.s32.totalorder %s78, %s80
      %p84 = scmp.eq.s32.totalorder %s23, 0
      %p85 = por %p83, %p84
      %p86 = scmp.ne.s32.totalorder %s78, %s80
      %p87 = scmp.eq.s32.totalorder %s28, 1
      %p88 = por %p86, %p87
      %p89 = scmp.ne.s32.totalorder %s80, %s81
      %p90 = scmp.eq.s32.totalorder %s28, 0
      %p91 = por %p89, %p90
      %p92 = scmp.ne.s32.totalorder %s80, %s81
      %p93 = scmp.eq.s32.totalorder %s29, 1
      %p94 = por %p92, %p93
      %p96 = scmp.ne.s32.totalorder %s81, %s95
      %p97 = scmp.eq.s32.totalorder %s29, 0
      %p98 = por %p96, %p97
      %s100 = sadd.s32 %s99, 1
      %p103 = scmp.eq.s32.totalorder %s23, 1
      %p104 = scmp.ne.s32.totalorder %s99, %s101
      %p105 = scmp.eq.s32.totalorder %s23, 0
      %p106 = por %p104, %p105
      %p107 = scmp.ne.s32.totalorder %s99, %s101
      %p108 = scmp.eq.s32.totalorder %s28, 1
      %p109 = por %p107, %p108
      %p110 = scmp.ne.s32.totalorder %s101, %s102
      %p111 = scmp.eq.s32.totalorder %s28, 0
      %p112 = por %p110, %p111
      %p113 = scmp.ne.s32.totalorder %s101, %s102
      %p114 = scmp.eq.s32.totalorder %s29, 1
      %p115 = por %p113, %p114
      %p117 = scmp.ne.s32.totalorder %s102, %s116
      %p118 = scmp.eq.s32.totalorder %s29, 0
      %p119 = por %p117, %p118
      %s121 = sadd.s32 %s120, 1
      %p124 = scmp.eq.s32.totalorder %s23, 1
      %p125 = scmp.ne.s32.totalorder %s120, %s122
      %p126 = scmp.eq.s32.totalorder %s23, 0
      %p127 = por %p125, %p126
      %p128 = scmp.ne.s32.totalorder %s120, %s122
      %p129 = scmp.eq.s32.totalorder %s28, 1
      %p130 = por %p128, %p129
      %p131 = scmp.ne.s32.totalorder %s122, %s123
      %p132 = scmp.eq.s32.totalorder %s28, 0
      %p133 = por %p131, %p132
      %p134 = scmp.ne.s32.totalorder %s122, %s123
      %p135 = scmp.eq.s32.totalorder %s29, 1
      %p136 = por %p134, %p135
      %p138 = scmp.ne.s32.totalorder %s123, %s137
      %p139 = scmp.eq.s32.totalorder %s29, 0
      %p140 = por %p138, %p139
      %s142 = sadd.s32 %s141, 1
      %p145 = scmp.eq.s32.totalorder %s23, 1
      %p146 = scmp.ne.s32.totalorder %s141, %s143
      %p147 = scmp.eq.s32.totalorder %s23, 0
      %p148 = por %p146, %p147
      %p149 = scmp.ne.s32.totalorder %s141, %s143
      %p150 = scmp.eq.s32.totalorder %s28, 1
      %p151 = por %p149, %p150
      %p152 = scmp.ne.s32.totalorder %s143, %s144
      %p153 = scmp.eq.s32.totalorder %s28, 0
      %p154 = por %p152, %p153
      %p155 = scmp.ne.s32.totalorder %s143, %s144
      %p156 = scmp.eq.s32.totalorder %s29, 1
      %p157 = por %p155, %p156
      %p159 = scmp.ne.s32.totalorder %s144, %s158
      %p160 = scmp.eq.s32.totalorder %s29, 0
      %p161 = por %p159, %p160
      %s163 = sadd.s32 %s162, 1
      %p166 = scmp.eq.s32.totalorder %s23, 1
      %p167 = scmp.ne.s32.totalorder %s162, %s164
      %p168 = scmp.eq.s32.totalorder %s23, 0
      %p169 = por %p167, %p168
      %p170 = scmp.ne.s32.totalorder %s162, %s164
      %p171 = scmp.eq.s32.totalorder %s28, 1
      %p172 = por %p170, %p171
      %p173 = scmp.ne.s32.totalorder %s164, %s165
      %p174 = scmp.eq.s32.totalorder %s28, 0
      %p175 = por %p173, %p174
      %p176 = scmp.ne.s32.totalorder %s164, %s165
      %p177 = scmp.eq.s32.totalorder %s29, 1
      %p178 = por %p176, %p177
      %p180 = scmp.ne.s32.totalorder %s165, %s179
      %p181 = scmp.eq.s32.totalorder %s29, 0
      %p182 = por %p180, %p181
      %s184 = sadd.s32 %s183, 1
      %p187 = scmp.eq.s32.totalorder %s23, 1
      %p188 = scmp.ne.s32.totalorder %s183, %s185
      %p189 = scmp.eq.s32.totalorder %s23, 0
      %p190 = por %p188, %p189
      %p191 = scmp.ne.s32.totalorder %s183, %s185
      %p192 = scmp.eq.s32.totalorder %s28, 1
      %p193 = por %p191, %p192
      %p194 = scmp.ne.s32.totalorder %s185, %s186
      %p195 = scmp.eq.s32.totalorder %s28, 0
      %p196 = por %p194, %p195
      %p197 = scmp.ne.s32.totalorder %s185, %s186
      %p198 = scmp.eq.s32.totalorder %s29, 1
      %p199 = por %p197, %p198
      %p201 = scmp.ne.s32.totalorder %s186, %s200
      %p202 = scmp.eq.s32.totalorder %s29, 0
      %p203 = por %p201, %p202
      %s205 = sadd.s32 %s204, 1
      %p208 = scmp.eq.s32.totalorder %s23, 1
      %p209 = scmp.ne.s32.totalorder %s204, %s206
      %p210 = scmp.eq.s32.totalorder %s23, 0
      %p211 = por %p209, %p210
      %p212 = scmp.ne.s32.totalorder %s204, %s206
      %p213 = scmp.eq.s32.totalorder %s28, 1
      %p214 = por %p212, %p213
      %p215 = scmp.ne.s32.totalorder %s206, %s207
      %p216 = scmp.eq.s32.totalorder %s28, 0
      %p217 = por %p215, %p216
      %p218 = scmp.ne.s32.totalorder %s206, %s207
      %p219 = scmp.eq.s32.totalorder %s29, 1
      %p220 = por %p218, %p219
      %p222 = scmp.ne.s32.totalorder %s207, %s221
      %p223 = scmp.eq.s32.totalorder %s29, 0
      %p224 = por %p222, %p223
      %s226 = sadd.s32 %s225, 1
      %p229 = scmp.eq.s32.totalorder %s23, 1
      %p230 = scmp.ne.s32.totalorder %s225, %s227
      %p231 = scmp.eq.s32.totalorder %s23, 0
      %p232 = por %p230, %p231
      %p233 = scmp.ne.s32.totalorder %s225, %s227
      %p234 = scmp.eq.s32.totalorder %s28, 1
      %p235 = por %p233, %p234
      %p236 = scmp.ne.s32.totalorder %s227, %s228
      %p237 = scmp.eq.s32.totalorder %s28, 0
      %p238 = por %p236, %p237
      %p239 = scmp.ne.s32.totalorder %s227, %s228
      %p240 = scmp.eq.s32.totalorder %s29, 1
      %p241 = por %p239, %p240
      %p243 = scmp.ne.s32.totalorder %s228, %s242
      %p244 = scmp.eq.s32.totalorder %s29, 0
      %p245 = por %p243, %p244
      %s247 = sadd.s32 %s246, 1
      %p250 = scmp.eq.s32.totalorder %s23, 1
      %p251 = scmp.ne.s32.totalorder %s246, %s248
      %p252 = scmp.eq.s32.totalorder %s23, 0
      %p253 = por %p251, %p252
      %p254 = scmp.ne.s32.totalorder %s246, %s248
      %p255 = scmp.eq.s32.totalorder %s28, 1
      %p256 = por %p254, %p255
      %p257 = scmp.ne.s32.totalorder %s248, %s249
      %p258 = scmp.eq.s32.totalorder %s28, 0
      %p259 = por %p257, %p258
      %p260 = scmp.ne.s32.totalorder %s248, %s249
      %p261 = scmp.eq.s32.totalorder %s29, 1
      %p262 = por %p260, %p261
      %p264 = scmp.ne.s32.totalorder %s249, %s263
      %p265 = scmp.eq.s32.totalorder %s29, 0
      %p266 = por %p264, %p265
      %s268 = sadd.s32 %s267, 1
      %p271 = scmp.eq.s32.totalorder %s23, 1
      %p272 = scmp.ne.s32.totalorder %s267, %s269
      %p273 = scmp.eq.s32.totalorder %s23, 0
      %p274 = por %p272, %p273
      %p275 = scmp.ne.s32.totalorder %s267, %s269
      %p276 = scmp.eq.s32.totalorder %s28, 1
      %p277 = por %p275, %p276
      %p278 = scmp.ne.s32.totalorder %s269, %s270
      %p279 = scmp.eq.s32.totalorder %s28, 0
      %p280 = por %p278, %p279
      %p281 = scmp.ne.s32.totalorder %s269, %s270
      %p282 = scmp.eq.s32.totalorder %s29, 1
      %p283 = por %p281, %p282
      %p285 = scmp.ne.s32.totalorder %s270, %s284
      %p286 = scmp.eq.s32.totalorder %s29, 0
      %p287 = por %p285, %p286
      %s289 = sadd.s32 %s288, 1
      %p292 = scmp.eq.s32.totalorder %s23, 1
      %p293 = scmp.ne.s32.totalorder %s288, %s290
      %p294 = scmp.eq.s32.totalorder %s23, 0
      %p295 = por %p293, %p294
      %p296 = scmp.ne.s32.totalorder %s288, %s290
      %p297 = scmp.eq.s32.totalorder %s28, 1
      %p298 = por %p296, %p297
      %p299 = scmp.ne.s32.totalorder %s290, %s291
      %p300 = scmp.eq.s32.totalorder %s28, 0
      %p301 = por %p299, %p300
      %p302 = scmp.ne.s32.totalorder %s290, %s291
      %p303 = scmp.eq.s32.totalorder %s29, 1
      %p304 = por %p302, %p303
      %p306 = scmp.ne.s32.totalorder %s291, %s305
      %p307 = scmp.eq.s32.totalorder %s29, 0
      %p308 = por %p306, %p307
      %s310 = sadd.s32 %s309, 1
      %p313 = scmp.eq.s32.totalorder %s23, 1
      %p314 = scmp.ne.s32.totalorder %s309, %s311
      %p315 = scmp.eq.s32.totalorder %s23, 0
      %p316 = por %p314, %p315
      %p317 = scmp.ne.s32.totalorder %s309, %s311
      %p318 = scmp.eq.s32.totalorder %s28, 1
      %p319 = por %p317, %p318
      %p320 = scmp.ne.s32.totalorder %s311, %s312
      %p321 = scmp.eq.s32.totalorder %s28, 0
      %p322 = por %p320, %p321
      %p323 = scmp.ne.s32.totalorder %s311, %s312
      %p324 = scmp.eq.s32.totalorder %s29, 1
      %p325 = por %p323, %p324
      %p327 = scmp.ne.s32.totalorder %s312, %s326
      %p328 = scmp.eq.s32.totalorder %s29, 0
      %p329 = por %p327, %p328
      %s330 = ssub.s32 %s23, %s30
      %p331 = scmp.eq.s32.totalorder %s330, 0
      %s333 = sadd.s32 %s332, 1
      %s334 = scalar_select %p331, %s332, %s333
      %p337 = pneg %p331
      %p338 = scmp.eq.s32.totalorder %s23, 1
      %p339 = por %p337, %p338
      %p340 = scmp.ne.s32.totalorder %s332, %s335
      %p341 = scmp.eq.s32.totalorder %s23, 0
      %p342 = por %p340, %p341
      %p343 = scmp.ne.s32.totalorder %s332, %s335
      %p344 = scmp.eq.s32.totalorder %s28, 1
      %p345 = por %p343, %p344
      %p346 = scmp.ne.s32.totalorder %s335, %s336
      %p347 = scmp.eq.s32.totalorder %s28, 0
      %p348 = por %p346, %p347
      %p349 = scmp.ne.s32.totalorder %s335, %s336
      %p350 = scmp.eq.s32.totalorder %s29, 1
      %p351 = por %p349, %p350
      %p353 = scmp.ne.s32.totalorder %s336, %s352
      %p354 = scmp.eq.s32.totalorder %s29, 0
      %p355 = por %p353, %p354
      %p356 = scmp.le.s32.totalorder 1, %s23
      %p357 = scmp.lt.s32.totalorder %s23, 3
      %p358 = pnand %p356, %p357
      %p359 = pneg %p358
      // Predicated region
      $region9: #{tpu_custom_call.1} parent=5 // pred_check
        _
      $region10: #{tpu_custom_call.1} parent=5 // pred_check_branch
        %361 = sbr.rel (%p358) target = $region12
      $region11: #{tpu_custom_call.1} parent=5 // pred_region
        %s362 = ssub.s32 %s23, 1
        // Predicated region
        $region13: #{tpu_custom_call.1} parent=11 // pred_check
          %p363 = pneg %p70
        $region14: #{tpu_custom_call.1} parent=11 // pred_check_branch
          %365 = sbr.rel (%p363) target = $region16
        $region15: #{tpu_custom_call.1} parent=11 // pred_region
          _
        $region16: #{tpu_custom_call.1} parent=11 // pred_fallthru
          _
        // Predicated region
        $region17: #{tpu_custom_call.1} parent=11 // pred_check
          %p366 = pneg %p91
        $region18: #{tpu_custom_call.1} parent=11 // pred_check_branch
          %368 = sbr.rel (%p366) target = $region20
        $region19: #{tpu_custom_call.1} parent=11 // pred_region
          _
        $region20: #{tpu_custom_call.1} parent=11 // pred_fallthru
          _
        // Predicated region
        $region21: #{tpu_custom_call.1} parent=11 // pred_check
          %p369 = pneg %p112
        $region22: #{tpu_custom_call.1} parent=11 // pred_check_branch
          %371 = sbr.rel (%p369) target = $region24
        $region23: #{tpu_custom_call.1} parent=11 // pred_region
          _
        $region24: #{tpu_custom_call.1} parent=11 // pred_fallthru
          _
        // Predicated region
        $region25: #{tpu_custom_call.1} parent=11 // pred_check
          %p372 = pneg %p133
        $region26: #{tpu_custom_call.1} parent=11 // pred_check_branch
          %374 = sbr.rel (%p372) target = $region28
        $region27: #{tpu_custom_call.1} parent=11 // pred_region
          _
        $region28: #{tpu_custom_call.1} parent=11 // pred_fallthru
          _
        // Predicated region
        $region29: #{tpu_custom_call.1} parent=11 // pred_check
          %p375 = pneg %p154
        $region30: #{tpu_custom_call.1} parent=11 // pred_check_branch
          %377 = sbr.rel (%p375) target = $region32
        $region31: #{tpu_custom_call.1} parent=11 // pred_region
          _
        $region32: #{tpu_custom_call.1} parent=11 // pred_fallthru
          _
        // Predicated region
        $region33: #{tpu_custom_call.1} parent=11 // pred_check
          %p378 = pneg %p175
        $region34: #{tpu_custom_call.1} parent=11 // pred_check_branch
          %380 = sbr.rel (%p378) target = $region36
        $region35: #{tpu_custom_call.1} parent=11 // pred_region
          _
        $region36: #{tpu_custom_call.1} parent=11 // pred_fallthru
          _
        // Predicated region
        $region37: #{tpu_custom_call.1} parent=11 // pred_check
          %p381 = pneg %p196
        $region38: #{tpu_custom_call.1} parent=11 // pred_check_branch
          %383 = sbr.rel (%p381) target = $region40
        $region39: #{tpu_custom_call.1} parent=11 // pred_region
          _
        $region40: #{tpu_custom_call.1} parent=11 // pred_fallthru
          _
        // Predicated region
        $region41: #{tpu_custom_call.1} parent=11 // pred_check
          %p384 = pneg %p217
        $region42: #{tpu_custom_call.1} parent=11 // pred_check_branch
          %386 = sbr.rel (%p384) target = $region44
        $region43: #{tpu_custom_call.1} parent=11 // pred_region
          _
        $region44: #{tpu_custom_call.1} parent=11 // pred_fallthru
          _
        // Predicated region
        $region45: #{tpu_custom_call.1} parent=11 // pred_check
          %p387 = pneg %p238
        $region46: #{tpu_custom_call.1} parent=11 // pred_check_branch
          %389 = sbr.rel (%p387) target = $region48
        $region47: #{tpu_custom_call.1} parent=11 // pred_region
          _
        $region48: #{tpu_custom_call.1} parent=11 // pred_fallthru
          _
        // Predicated region
        $region49: #{tpu_custom_call.1} parent=11 // pred_check
          %p390 = pneg %p259
        $region50: #{tpu_custom_call.1} parent=11 // pred_check_branch
          %392 = sbr.rel (%p390) target = $region52
        $region51: #{tpu_custom_call.1} parent=11 // pred_region
          _
        $region52: #{tpu_custom_call.1} parent=11 // pred_fallthru
          _
        // Predicated region
        $region53: #{tpu_custom_call.1} parent=11 // pred_check
          %p393 = pneg %p280
        $region54: #{tpu_custom_call.1} parent=11 // pred_check_branch
          %395 = sbr.rel (%p393) target = $region56
        $region55: #{tpu_custom_call.1} parent=11 // pred_region
          _
        $region56: #{tpu_custom_call.1} parent=11 // pred_fallthru
          _
        // Predicated region
        $region57: #{tpu_custom_call.1} parent=11 // pred_check
          %p396 = pneg %p301
        $region58: #{tpu_custom_call.1} parent=11 // pred_check_branch
          %398 = sbr.rel (%p396) target = $region60
        $region59: #{tpu_custom_call.1} parent=11 // pred_region
          _
        $region60: #{tpu_custom_call.1} parent=11 // pred_fallthru
          _
        // Predicated region
        $region61: #{tpu_custom_call.1} parent=11 // pred_check
          %p399 = pneg %p322
        $region62: #{tpu_custom_call.1} parent=11 // pred_check_branch
          %401 = sbr.rel (%p399) target = $region64
        $region63: #{tpu_custom_call.1} parent=11 // pred_region
          _
        $region64: #{tpu_custom_call.1} parent=11 // pred_fallthru
          _
      $region12: #{tpu_custom_call.1} parent=5 // pred_fallthru
        _
      %p402 = scmp.lt.s32.totalorder %s23, 2
      // Predicated region
      $region65: #{tpu_custom_call.1} parent=5 // pred_check
        %p403 = pneg %p402
      $region66: #{tpu_custom_call.1} parent=5 // pred_check_branch
        %405 = sbr.rel (%p403) target = $region68
      $region67: #{tpu_custom_call.1} parent=5 // pred_region
        // Predicated region
        $region69: #{tpu_custom_call.1} parent=67 // pred_check
          %p406 = pneg %p43
        $region70: #{tpu_custom_call.1} parent=67 // pred_check_branch
          %408 = sbr.rel (%p406) target = $region72
        $region71: #{tpu_custom_call.1} parent=67 // pred_region
          %p409 = scmp.lt.s32.totalorder %s23, 1
          %s410 = scalar_select %p409, %s23, 1
          %s411 = smul.addr %s410, 4
          %s412 = scalar_lea.vmem %s0, %s411
        $region72: #{tpu_custom_call.1} parent=67 // pred_fallthru
          _
      $region68: #{tpu_custom_call.1} parent=5 // pred_fallthru
        _
      %p413 = scmp.le.s32.totalorder 1, %s23
      %p414 = scmp.lt.s32.totalorder %s23, 3
      %p415 = pnand %p413, %p414
      %p416 = pneg %p415
      // Predicated region
      $region73: #{tpu_custom_call.1} parent=5 // pred_check
        _
      $region74: #{tpu_custom_call.1} parent=5 // pred_check_branch
        %418 = sbr.rel (%p415) target = $region76
      $region75: #{tpu_custom_call.1} parent=5 // pred_region
        %s419 = ssub.s32 %s23, 1
        %p420 = scmp.lt.s32.totalorder %s28, 1
        %s421 = scalar_select %p420, %s28, 1
        %s422 = smul.addr %s421, 4
        %s423 = scalar_lea.vmem %s0, %s422
        %p424 = pneg %p49
        %p425 = pneg %p46
        %p426 = pneg %p70
        %p427 = pneg %p67
        %p428 = pneg %p91
        %p429 = pneg %p88
        %p430 = pneg %p112
        %p431 = pneg %p109
        %p432 = pneg %p133
        %p433 = pneg %p130
        %p434 = pneg %p154
        %p435 = pneg %p151
        %p436 = pneg %p175
        %p437 = pneg %p172
        %p438 = pneg %p196
        %p439 = pneg %p193
        %p440 = pneg %p217
        %p441 = pneg %p214
        %p442 = pneg %p238
        %p443 = pneg %p235
        %p444 = pneg %p259
        %p445 = pneg %p256
        %p446 = pneg %p280
        %p447 = pneg %p277
        %p448 = pneg %p301
        %p449 = pneg %p298
        %p450 = pneg %p322
        %p451 = pneg %p319
        %p452 = pneg %p348
        %p453 = pneg %p345
        %s454 = sand.u32 %s335, 1
        %s455 = scalar_lea.sflag [#allocation3], %s454
        %s456 = sand.u32 %s335, 1
        %s457 = smul.addr %s456, 4
        %s458 = scalar_lea.vmem [#allocation2], %s457
        %p459 = scmp.lt.s32.totalorder %s28, 1
        %s460 = scalar_select %p459, %s28, 1
        %s461 = smul.addr %s460, 4
        %s462 = scalar_lea.vmem %s0, %s461
        %v464 = vld [vmem:[%s462] sm:$0xf]
        %v465 = vunpack.c.l.bf16 %v464
        %vm466 = vcmask 261120
        %v467 = vsel %vm466, %v465, 0.0
        %468 = vadd.xlane.f32.xlu0 %v467
        %v469 = vpop.xlane.xlu0 %468
        %v470 = vrcp.pop 32.0
        %v471 = vmul.f32 32.0, %v470
        %v472 = vsub.f32 1.0, %v471
        %v473 = vmul.f32 %v470, %v472
        %v474 = vadd.f32 %v470, %v473
        %vm475 = vweird.f32 %v470
        %v476 = vsel %vm475, %v470, %v474
        %v477 = vmul.f32 %v469, %v476
        %v478 = vsub.f32 %v465, %v477
        %v479 = vmul.f32 %v478, %v478
        %v480 = vsel %vm466, %v479, 0.0
        %481 = vadd.xlane.f32.xlu0 %v480
        %v482 = vpop.xlane.xlu0 %481
        %v483 = vmul.f32 %v482, %v476
        %v484 = vadd.f32 %v483, 1e-05
        %v485 = vrsqrt.pop %v484
        %v486 = vmul.f32 %v485, %v484
        %v487 = vmul.f32 %v486, %v485
        %v488 = vmul.f32 0.5, %v487
        %v489 = vsub.f32 1.5, %v488
        %v490 = vmul.f32 %v485, %v489
        %vm491 = vweird.f32 %v484
        %vm492 = vweird.f32 %v485
        %vm493 = vmor %vm491, %vm492
        %v494 = vsel %vm493, %v485, %v490
        %v495 = vmul.f32 %v478, %v494
        %v496 = vld [vmem:[%s2] sm:$0x1]
        %v498 = vperm.slane %v496, 0
        %v500 = vmul.f32 %v495, %v498
        %v501 = vld [vmem:[%s3] sm:$0x1]
        %v503 = vperm.slane %v501, 0
        %v505 = vadd.f32 %v500, %v503
        %v506 = vpack.c.bf16 %v505, %v505
        %v507 = vld [vmem:[%s4] sm:$0xf]
        %v508 = vld [vmem:[%s4 + $0x4] sm:$0xf]
        %v509 = vld [vmem:[%s4 + $0x8] sm:$0xf]
        %v510 = vld [vmem:[%s4 + $0xc] sm:$0xf]
        %v511 = vld [vmem:[%s5] sm:$0x1]
        %v513 = vperm.slane %v511, 0
        %v519 = vunpack.c.l.b16 %v507
        %v520 = vunpack.c.l.b16 %v508
        %v521 = vunpack.c.l.b16 %v509
        %v522 = vunpack.c.l.b16 %v510
        %v523 = vpack.c.b16 %v520, %v519
        %v524 = vpack.c.b16 %v522, %v521
        %v528 = vsel %vm466, %v506, 0
        %530 = vmatpush.bf16.msra.mxu0 0
        %531 = vmatpush.bf16.msra.mxu0 0
        %532 = vmatpush.bf16.msra.mxu0 0
        %533 = vmatpush.bf16.msra.mxu0 0
        %534 = vmatpush.bf16.msra.mxu0 0
        %535 = vmatpush.bf16.msra.mxu0 0
        %536 = vmatpush.bf16.msra.mxu0 %v524
        %537 = vmatpush.bf16.msra.mxu0 %v523
        %538 = vmatmul.bf16.gmra.mxu0 %v528
        %v539 = vpop.f32.mrf.mxu0
        %v540 = vadd.f32 %v513, %v539
        %v541 = vpop.f32.mrf.mxu0
        %542 = vdwg.mxu0
        %v543 = vpack.c.bf16 %v540, %v540
        %v544 = vld [vmem:[%s1] sm:$0xff]
        %v546 = vunpack.c.l.b16 %v543
        %v547 = vpack.c.b16 %v546, %v546
        %548 = vrot.lane.b32.xlu0 %v547, 96
        %v549 = vpop.permute.xlu0 %548
        %vm550 = vcmask 64512
        %v552 = vsel %vm550, %v543, 0
        %v555 = vsel %vm550, %v549, 0
        %557 = vmatpush.bf16.xpose.msra.mxu0 0
        %558 = vmatpush.bf16.xpose.msra.mxu0 0
        %559 = vmatpush.bf16.xpose.msra.mxu0 0
        %560 = vmatpush.bf16.xpose.msra.mxu0 0
        %561 = vmatpush.bf16.xpose.msra.mxu0 0
        %562 = vmatpush.bf16.xpose.msra.mxu0 0
        %563 = vmatpush.bf16.xpose.msra.mxu0 0
        %564 = vmatpush.bf16.xpose.msra.mxu0 %v555
        %565 = vmatmul.bf16.gmra.mxu0 %v552
        %v566 = vpop.f32.mrf.mxu0
        %v567 = vadd.f32 0.0, %v566
        %v568 = vpop.f32.mrf.mxu0
        %569 = vdwg.mxu0
        %v570 = vmul.f32 %v567, 0.35355338
        %v571 = vadd.f32 %v570, %v544
        %v572 = vsel %vm550, %v571, -inf
        %573 = vmax.xlane.f32.xlu0 %v572
        %v574 = vpop.xlane.xlu0 %573
        %v575 = vsub.f32 %v571, %v574
        %v576 = vmul.f32 %v575, 1.442695
        %v577 = vpow.pop %v576
        %v578 = vsel %vm550, %v577, 0.0
        %579 = vadd.xlane.f32.xlu0 %v578
        %v580 = vpop.xlane.xlu0 %579
        %v581 = vrcp.pop %v580
        %v582 = vmul.f32 %v577, %v581
        %v583 = vpack.c.bf16 %v582, %v582
        %584 = vrot.lane.b32.xlu0 %v547, 64
        %v585 = vpop.permute.xlu0 %584
        %v587 = vsel %vm550, %v583, 0
        %vm589 = vcmask 1043456
        %v591 = vsel %vm589, %v585, 0
        %593 = vmatpush.bf16.msra.mxu0 0
        %594 = vmatpush.bf16.msra.mxu0 0
        %595 = vmatpush.bf16.msra.mxu0 0
        %596 = vmatpush.bf16.msra.mxu0 0
        %597 = vmatpush.bf16.msra.mxu0 0
        %598 = vmatpush.bf16.msra.mxu0 0
        %599 = vmatpush.bf16.msra.mxu0 0
        %600 = vmatpush.bf16.msra.mxu0 %v591
        %601 = vmatmul.bf16.gmra.mxu0 %v587
        %v602 = vpop.f32.mrf.mxu0
        %v603 = vadd.f32 0.0, %v602
        %v604 = vpop.f32.mrf.mxu0
        %605 = vdwg.mxu0
        %606 = vrot.lane.b32.xlu0 %v547, 120
        %v607 = vpop.permute.xlu0 %606
        %608 = vrot.lane.b32.xlu0 %v547, 88
        %v609 = vpop.permute.xlu0 %608
        %v611 = vsel %vm550, %v607, 0
        %v614 = vsel %vm550, %v609, 0
        %616 = vmatpush.bf16.xpose.msra.mxu0 0
        %617 = vmatpush.bf16.xpose.msra.mxu0 0
        %618 = vmatpush.bf16.xpose.msra.mxu0 0
        %619 = vmatpush.bf16.xpose.msra.mxu0 0
        %620 = vmatpush.bf16.xpose.msra.mxu0 0
        %621 = vmatpush.bf16.xpose.msra.mxu0 0
        %622 = vmatpush.bf16.xpose.msra.mxu0 0
        %623 = vmatpush.bf16.xpose.msra.mxu0 %v614
        %624 = vmatmul.bf16.gmra.mxu0 %v611
        %v625 = vpop.f32.mrf.mxu0
        %v626 = vadd.f32 0.0, %v625
        %v627 = vpop.f32.mrf.mxu0
        %628 = vdwg.mxu0
        %v629 = vmul.f32 %v626, 0.35355338
        %v630 = vadd.f32 %v629, %v544
        %v631 = vsel %vm550, %v630, -inf
        %632 = vmax.xlane.f32.xlu0 %v631
        %v633 = vpop.xlane.xlu0 %632
        %v634 = vsub.f32 %v630, %v633
        %v635 = vmul.f32 %v634, 1.442695
        %v636 = vpow.pop %v635
        %v637 = vsel %vm550, %v636, 0.0
        %638 = vadd.xlane.f32.xlu0 %v637
        %v639 = vpop.xlane.xlu0 %638
        %v640 = vrcp.pop %v639
        %v641 = vmul.f32 %v636, %v640
        %v642 = vpack.c.bf16 %v641, %v641
        %643 = vrot.lane.b32.xlu0 %v547, 56
        %v644 = vpop.permute.xlu0 %643
        %v646 = vsel %vm550, %v642, 0
        %v649 = vsel %vm589, %v644, 0
        %651 = vmatpush.bf16.msra.mxu0 0
        %652 = vmatpush.bf16.msra.mxu0 0
        %653 = vmatpush.bf16.msra.mxu0 0
        %654 = vmatpush.bf16.msra.mxu0 0
        %655 = vmatpush.bf16.msra.mxu0 0
        %656 = vmatpush.bf16.msra.mxu0 0
        %657 = vmatpush.bf16.msra.mxu0 0
        %658 = vmatpush.bf16.msra.mxu0 %v649
        %659 = vmatmul.bf16.gmra.mxu0 %v646
        %v660 = vpop.f32.mrf.mxu0
        %v661 = vadd.f32 0.0, %v660
        %v662 = vpop.f32.mrf.mxu0
        %663 = vdwg.mxu0
        %664 = vrot.lane.b32.xlu0 %v547, 112
        %v665 = vpop.permute.xlu0 %664
        %666 = vrot.lane.b32.xlu0 %v547, 80
        %v667 = vpop.permute.xlu0 %666
        %v669 = vsel %vm550, %v665, 0
        %v672 = vsel %vm550, %v667, 0
        %674 = vmatpush.bf16.xpose.msra.mxu0 0
        %675 = vmatpush.bf16.xpose.msra.mxu0 0
        %676 = vmatpush.bf16.xpose.msra.mxu0 0
        %677 = vmatpush.bf16.xpose.msra.mxu0 0
        %678 = vmatpush.bf16.xpose.msra.mxu0 0
        %679 = vmatpush.bf16.xpose.msra.mxu0 0
        %680 = vmatpush.bf16.xpose.msra.mxu0 0
        %681 = vmatpush.bf16.xpose.msra.mxu0 %v672
        %682 = vmatmul.bf16.gmra.mxu0 %v669
        %v683 = vpop.f32.mrf.mxu0
        %v684 = vadd.f32 0.0, %v683
        %v685 = vpop.f32.mrf.mxu0
        %686 = vdwg.mxu0
        %v687 = vmul.f32 %v684, 0.35355338
        %v688 = vadd.f32 %v687, %v544
        %v689 = vsel %vm550, %v688, -inf
        %690 = vmax.xlane.f32.xlu0 %v689
        %v691 = vpop.xlane.xlu0 %690
        %v692 = vsub.f32 %v688, %v691
        %v693 = vmul.f32 %v692, 1.442695
        %v694 = vpow.pop %v693
        %v695 = vsel %vm550, %v694, 0.0
        %696 = vadd.xlane.f32.xlu0 %v695
        %v697 = vpop.xlane.xlu0 %696
        %v698 = vrcp.pop %v697
        %v699 = vmul.f32 %v694, %v698
        %v700 = vpack.c.bf16 %v699, %v699
        %701 = vrot.lane.b32.xlu0 %v547, 48
        %v702 = vpop.permute.xlu0 %701
        %v704 = vsel %vm550, %v700, 0
        %v707 = vsel %vm589, %v702, 0
        %709 = vmatpush.bf16.msra.mxu0 0
        %710 = vmatpush.bf16.msra.mxu0 0
        %711 = vmatpush.bf16.msra.mxu0 0
        %712 = vmatpush.bf16.msra.mxu0 0
        %713 = vmatpush.bf16.msra.mxu0 0
        %714 = vmatpush.bf16.msra.mxu0 0
        %715 = vmatpush.bf16.msra.mxu0 0
        %716 = vmatpush.bf16.msra.mxu0 %v707
        %717 = vmatmul.bf16.gmra.mxu0 %v704
        %v718 = vpop.f32.mrf.mxu0
        %v719 = vadd.f32 0.0, %v718
        %v720 = vpop.f32.mrf.mxu0
        %721 = vdwg.mxu0
        %722 = vrot.lane.b32.xlu0 %v547, 104
        %v723 = vpop.permute.xlu0 %722
        %724 = vrot.lane.b32.xlu0 %v547, 72
        %v725 = vpop.permute.xlu0 %724
        %v727 = vsel %vm550, %v723, 0
        %v730 = vsel %vm550, %v725, 0
        %732 = vmatpush.bf16.xpose.msra.mxu0 0
        %733 = vmatpush.bf16.xpose.msra.mxu0 0
        %734 = vmatpush.bf16.xpose.msra.mxu0 0
        %735 = vmatpush.bf16.xpose.msra.mxu0 0
        %736 = vmatpush.bf16.xpose.msra.mxu0 0
        %737 = vmatpush.bf16.xpose.msra.mxu0 0
        %738 = vmatpush.bf16.xpose.msra.mxu0 0
        %739 = vmatpush.bf16.xpose.msra.mxu0 %v730
        %740 = vmatmul.bf16.gmra.mxu0 %v727
        %v741 = vpop.f32.mrf.mxu0
        %v742 = vadd.f32 0.0, %v741
        %v743 = vpop.f32.mrf.mxu0
        %744 = vdwg.mxu0
        %v745 = vmul.f32 %v742, 0.35355338
        %v746 = vadd.f32 %v745, %v544
        %v747 = vsel %vm550, %v746, -inf
        %748 = vmax.xlane.f32.xlu0 %v747
        %v749 = vpop.xlane.xlu0 %748
        %v750 = vsub.f32 %v746, %v749
        %v751 = vmul.f32 %v750, 1.442695
        %v752 = vpow.pop %v751
        %v753 = vsel %vm550, %v752, 0.0
        %754 = vadd.xlane.f32.xlu0 %v753
        %v755 = vpop.xlane.xlu0 %754
        %v756 = vrcp.pop %v755
        %v757 = vmul.f32 %v752, %v756
        %v758 = vpack.c.bf16 %v757, %v757
        %759 = vrot.lane.b32.xlu0 %v547, 40
        %v760 = vpop.permute.xlu0 %759
        %v762 = vsel %vm550, %v758, 0
        %v765 = vsel %vm589, %v760, 0
        %767 = vmatpush.bf16.msra.mxu0 0
        %768 = vmatpush.bf16.msra.mxu0 0
        %769 = vmatpush.bf16.msra.mxu0 0
        %770 = vmatpush.bf16.msra.mxu0 0
        %771 = vmatpush.bf16.msra.mxu0 0
        %772 = vmatpush.bf16.msra.mxu0 0
        %773 = vmatpush.bf16.msra.mxu0 0
        %774 = vmatpush.bf16.msra.mxu0 %v765
        %775 = vmatmul.bf16.gmra.mxu0 %v762
        %v776 = vpop.f32.mrf.mxu0
        %v777 = vadd.f32 0.0, %v776
        %v778 = vpop.f32.mrf.mxu0
        %779 = vdwg.mxu0
        %781 = vrot.lane.b32.xlu0 %v661, 8
        %v782 = vpop.permute.xlu0 %781
        %785 = vrot.lane.b32.xlu0 %v719, 16
        %v786 = vpop.permute.xlu0 %785
        %789 = vrot.lane.b32.xlu0 %v777, 24
        %v790 = vpop.permute.xlu0 %789
        %v792 = vsel %vm550, %v603, %v782
        %vm793 = vcmask 130048
        %v794 = vsel %vm793, %v792, %v786
        %vm795 = vcmask 195584
        %v796 = vsel %vm795, %v794, %v790
        %v797 = vpack.c.bf16 %v796, %v796
        %v798 = vld [vmem:[%s6] sm:$0xf]
        %v799 = vld [vmem:[%s6 + $0x4] sm:$0xf]
        %v800 = vld [vmem:[%s6 + $0x8] sm:$0xf]
        %v801 = vld [vmem:[%s6 + $0xc] sm:$0xf]
        %v802 = vld [vmem:[%s7] sm:$0x1]
        %v804 = vperm.slane %v802, 0
        %v810 = vunpack.c.l.b16 %v798
        %v811 = vunpack.c.l.b16 %v799
        %v812 = vunpack.c.l.b16 %v800
        %v813 = vunpack.c.l.b16 %v801
        %v814 = vpack.c.b16 %v811, %v810
        %v815 = vpack.c.b16 %v813, %v812
        %v819 = vsel %vm466, %v797, 0
        %821 = vmatpush.bf16.msra.mxu0 0
        %822 = vmatpush.bf16.msra.mxu0 0
        %823 = vmatpush.bf16.msra.mxu0 0
        %824 = vmatpush.bf16.msra.mxu0 0
        %825 = vmatpush.bf16.msra.mxu0 0
        %826 = vmatpush.bf16.msra.mxu0 0
        %827 = vmatpush.bf16.msra.mxu0 %v815
        %828 = vmatpush.bf16.msra.mxu0 %v814
        %829 = vmatmul.bf16.gmra.mxu0 %v819
        %v830 = vpop.f32.mrf.mxu0
        %v831 = vadd.f32 %v804, %v830
        %v832 = vpop.f32.mrf.mxu0
        %833 = vdwg.mxu0
        %v834 = vadd.f32 %v465, %v831
        %v835 = vsel %vm466, %v834, 0.0
        %836 = vadd.xlane.f32.xlu0 %v835
        %v837 = vpop.xlane.xlu0 %836
        %v838 = vmul.f32 %v837, %v476
        %v839 = vsub.f32 %v834, %v838
        %v840 = vmul.f32 %v839, %v839
        %v841 = vsel %vm466, %v840, 0.0
        %842 = vadd.xlane.f32.xlu0 %v841
        %v843 = vpop.xlane.xlu0 %842
        %v844 = vmul.f32 %v843, %v476
        %v845 = vadd.f32 %v844, 1e-05
        %v846 = vrsqrt.pop %v845
        %v847 = vmul.f32 %v846, %v845
        %v848 = vmul.f32 %v847, %v846
        %v849 = vmul.f32 0.5, %v848
        %v850 = vsub.f32 1.5, %v849
        %v851 = vmul.f32 %v846, %v850
        %vm852 = vweird.f32 %v845
        %vm853 = vweird.f32 %v846
        %vm854 = vmor %vm852, %vm853
        %v855 = vsel %vm854, %v846, %v851
        %v856 = vmul.f32 %v839, %v855
        %v857 = vld [vmem:[%s8] sm:$0x1]
        %v859 = vperm.slane %v857, 0
        %v861 = vmul.f32 %v856, %v859
        %v862 = vld [vmem:[%s9] sm:$0x1]
        %v864 = vperm.slane %v862, 0
        %v866 = vadd.f32 %v861, %v864
        %v867 = vpack.c.bf16 %v866, %v866
        %v868 = vld [vmem:[%s10] sm:$0xf]
        %v869 = vld [vmem:[%s10 + $0x4] sm:$0xf]
        %v870 = vld [vmem:[%s10 + $0x8] sm:$0xf]
        %v871 = vld [vmem:[%s10 + $0xc] sm:$0xf]
        %v872 = vld [vmem:[%s11] sm:$0x1]
        %v874 = vperm.slane %v872, 0
        %v880 = vunpack.c.l.b16 %v868
        %v881 = vunpack.c.l.b16 %v869
        %v882 = vunpack.c.l.b16 %v870
        %v883 = vunpack.c.l.b16 %v871
        %v884 = vpack.c.b16 %v881, %v880
        %v885 = vpack.c.b16 %v883, %v882
        %v889 = vsel %vm466, %v867, 0
        %891 = vmatpush.bf16.msra.mxu0 0
        %892 = vmatpush.bf16.msra.mxu0 0
        %893 = vmatpush.bf16.msra.mxu0 0
        %894 = vmatpush.bf16.msra.mxu0 0
        %895 = vmatpush.bf16.msra.mxu0 0
        %896 = vmatpush.bf16.msra.mxu0 0
        %897 = vmatpush.bf16.msra.mxu0 %v885
        %898 = vmatpush.bf16.msra.mxu0 %v884
        %899 = vmatmul.bf16.gmra.mxu0 %v889
        %v900 = vpop.f32.mrf.mxu0
        %v901 = vadd.f32 %v874, %v900
        %v902 = vpop.f32.mrf.mxu0
        %903 = vdwg.mxu0
        %v904 = vmul.f32 %v901, 1.702
        %v905 = vxor.u32 %v904, 2147483648
        %v906 = vmul.f32 %v905, 1.442695
        %v907 = vpow.pop %v906
        %v908 = vadd.f32 %v907, 1.0
        %v909 = vrcp.pop %v908
        %v910 = vmul.f32 %v908, %v909
        %v911 = vsub.f32 1.0, %v910
        %v912 = vmul.f32 %v909, %v911
        %v913 = vadd.f32 %v909, %v912
        %vm914 = vweird.f32 %v908
        %vm915 = vweird.f32 %v909
        %vm916 = vmor %vm914, %vm915
        %v917 = vsel %vm916, %v909, %v913
        %v918 = vand.u32 2147483647, %v908
        %vm919 = vcmp.eq.f32.partialorder %v918, 8.507059e+37
        %v920 = vand.u32 %v908, 2147483648
        %v921 = vor.u32 1.1754944e-38, %v920
        %v922 = vsel %vm919, %v921, %v917
        %v923 = vmul.f32 1.0, %v922
        %v924 = vmul.f32 %v901, %v923
        %v925 = vpack.c.bf16 %v924, %v924
        %v926 = vld [vmem:[%s12] sm:$0xf]
        %v927 = vld [vmem:[%s12 + $0x4] sm:$0xf]
        %v928 = vld [vmem:[%s12 + $0x8] sm:$0xf]
        %v929 = vld [vmem:[%s12 + $0xc] sm:$0xf]
        %v930 = vld [vmem:[%s12 + $0x10] sm:$0xf]
        %v931 = vld [vmem:[%s12 + $0x14] sm:$0xf]
        %v932 = vld [vmem:[%s12 + $0x18] sm:$0xf]
        %v933 = vld [vmem:[%s12 + $0x1c] sm:$0xf]
        %v934 = vld [vmem:[%s12 + $0x20] sm:$0xf]
        %v935 = vld [vmem:[%s12 + $0x24] sm:$0xf]
        %v936 = vld [vmem:[%s12 + $0x28] sm:$0xf]
        %v937 = vld [vmem:[%s12 + $0x2c] sm:$0xf]
        %v938 = vld [vmem:[%s12 + $0x30] sm:$0xf]
        %v939 = vld [vmem:[%s12 + $0x34] sm:$0xf]
        %v940 = vld [vmem:[%s12 + $0x38] sm:$0xf]
        %v941 = vld [vmem:[%s12 + $0x3c] sm:$0xf]
        %v942 = vld [vmem:[%s13] sm:$0x1]
        %v944 = vperm.slane %v942, 0
        %v962 = vunpack.c.l.b16 %v926
        %v963 = vunpack.c.l.b16 %v927
        %v964 = vunpack.c.l.b16 %v928
        %v965 = vunpack.c.l.b16 %v929
        %v966 = vunpack.c.l.b16 %v930
        %v967 = vunpack.c.l.b16 %v931
        %v968 = vunpack.c.l.b16 %v932
        %v969 = vunpack.c.l.b16 %v933
        %v970 = vunpack.c.l.b16 %v934
        %v971 = vunpack.c.l.b16 %v935
        %v972 = vunpack.c.l.b16 %v936
        %v973 = vunpack.c.l.b16 %v937
        %v974 = vunpack.c.l.b16 %v938
        %v975 = vunpack.c.l.b16 %v939
        %v976 = vunpack.c.l.b16 %v940
        %v977 = vunpack.c.l.b16 %v941
        %v978 = vpack.c.b16 %v963, %v962
        %v979 = vpack.c.b16 %v965, %v964
        %v980 = vpack.c.b16 %v967, %v966
        %v981 = vpack.c.b16 %v969, %v968
        %v982 = vpack.c.b16 %v971, %v970
        %v983 = vpack.c.b16 %v973, %v972
        %v984 = vpack.c.b16 %v975, %v974
        %v985 = vpack.c.b16 %v977, %v976
        %994 = vmatpush.bf16.msra.mxu0 %v985
        %995 = vmatpush.bf16.msra.mxu0 %v984
        %996 = vmatpush.bf16.msra.mxu0 %v983
        %997 = vmatpush.bf16.msra.mxu0 %v982
        %998 = vmatpush.bf16.msra.mxu0 %v981
        %999 = vmatpush.bf16.msra.mxu0 %v980
        %1000 = vmatpush.bf16.msra.mxu0 %v979
        %1001 = vmatpush.bf16.msra.mxu0 %v978
        %1002 = vmatmul.bf16.gmra.mxu0 %v925
        %v1003 = vpop.f32.mrf.mxu0
        %v1004 = vadd.f32 %v944, %v1003
        %v1005 = vpop.f32.mrf.mxu0
        %1006 = vdwg.mxu0
        %v1007 = vadd.f32 %v834, %v1004
        %v1008 = vpack.c.bf16 %v1007, %v1007
        %vm1009 = vcmask 257024
        %1010 = vst.msk [vmem:[%s458] sm:$0xf] %vm1009, %v1008
        %s1011 = sand.u32 %s335, 1
        %s1012 = scalar_lea.sflag [#allocation3], %s1011
        %s1013 = sand.u32 %s335, 1
        %s1014 = smul.addr %s1013, 4
        %s1015 = scalar_lea.vmem [#allocation2], %s1014
        // Predicated region
        $region77: #{tpu_custom_call.1} parent=75 // pred_check
          %p1016 = pneg %p345
        $region78: #{tpu_custom_call.1} parent=75 // pred_check_branch
          %1018 = sbr.rel (%p1016) target = $region80
        $region79: #{tpu_custom_call.1} parent=75 // pred_region
          %1020 = vsyncadd %s1012, 0
          %s1021 = smul.addr %s28, 4
          %s1022 = scalar_lea.hbm %s14, %s1021
          %s1024 = sshll.u32 %s1015, 4
          %s1025 = int_to_ptr.vmem [resolvable:$true] %s1024
          %s1026 = sshll.u32 %s1022, 4
          %s1027 = int_to_ptr.hbm [resolvable:$true] %s1026
          %1029 = dma.vmem_to_hbm [thread:$0]  %s1025, 64, %s1027, %s1012
        $region80: #{tpu_custom_call.1} parent=75 // pred_fallthru
          _
      $region76: #{tpu_custom_call.1} parent=5 // pred_fallthru
        _
      %p1030 = scmp.le.s32.totalorder 2, %s23
      // Predicated region
      $region81: #{tpu_custom_call.1} parent=5 // pred_check
        %p1031 = pneg %p1030
      $region82: #{tpu_custom_call.1} parent=5 // pred_check_branch
        %1033 = sbr.rel (%p1031) target = $region84
      $region83: #{tpu_custom_call.1} parent=5 // pred_region
        %s1034 = ssub.s32 %s23, 2
        // Predicated region
        $region85: #{tpu_custom_call.1} parent=83 // pred_check
          %p1035 = pneg %p351
        $region86: #{tpu_custom_call.1} parent=83 // pred_check_branch
          %1037 = sbr.rel (%p1035) target = $region88
        $region87: #{tpu_custom_call.1} parent=83 // pred_region
          %s1038 = sand.u32 %s336, 1
          %s1039 = scalar_lea.sflag [#allocation3], %s1038
          %s1040 = sand.u32 %s336, 1
          %s1041 = smul.addr %s1040, 4
          %s1042 = scalar_lea.vmem [#allocation2], %s1041
          %1044 = dma.done %s1039, 64
        $region88: #{tpu_custom_call.1} parent=83 // pred_fallthru
          _
      $region84: #{tpu_custom_call.1} parent=5 // pred_fallthru
        _
    $region6: #{tpu_custom_call.1} parent=1 // loop_footer
      %s27 = sadd.s32 1, %s23
    $region7: #{tpu_custom_call.1} parent=1 // loop_footer_branch
      %22 = sbr.rel target = $region3
    $region8: #{tpu_custom_call.1} parent=1 // loop_exit
      _
    %1045 = vsyncpa [#allocation3], 1
    %s1046 = scalar_lea.sflag [#allocation3], 1
    %1047 = vsyncpa %s1046, 1

</llo_original>
